<compile_context>
chip_gen: v7x
topology: tpu7x:2x2x1
jax: 0.10.0
libtpu: 0.0.40
codegen_flags: <defaults>
</compile_context>

<pallas_src>
import math

import jax
import jax.numpy as jnp
from jax.experimental import pallas as pl
from jax.experimental.pallas import tpu as pltpu

IN_FEATURES = 28 * 28      # 784
HIDDEN_1 = 500
HIDDEN_2 = 1000

H1_PAD = 512               # hidden_1 padded to a lane multiple (K of the 2nd matmul)

_SUBLANE = 8               # f32 sublane packing (x / out tiles are f32)
_MAX_TB = 512              # batch tile for large batches (amortizes grid-step overhead)


def _round_up(x, m):
    return ((x + m - 1) // m) * m


def _layer1_kernel(x_ref, w1_ref, b1_ref, w2_ref, b2_ref, o_ref):
    """Fused MLP forward on one batch tile: relu(relu(x @ W1 + b1) @ W2 + b2)."""
    x = x_ref[...].astype(jnp.bfloat16)                                # (TB, 784) cast in-kernel
    h = jnp.dot(x, w1_ref[...], preferred_element_type=jnp.float32)   # MXU, f32 acc -> (TB, 512)
    h = jnp.maximum(h + b1_ref[...], 0.0)                             # f32 epilogue (VPU)
    y = jnp.dot(h.astype(jnp.bfloat16), w2_ref[...],
                preferred_element_type=jnp.float32)                   # MXU, f32 acc -> (TB, 1000)
    y = jnp.maximum(y + b2_ref[...], 0.0)
    o_ref[...] = y.astype(o_ref.dtype)


def prepare_params(w1, b1, w2, b2):
    """One-time weight prep (hoisted out of the per-call hot path).

    w1: (784, 500)  b1: (500,)  w2: (500, 1000)  b2: (1000,)  (f32, torch weights transposed)
    Pads hidden_1 500 -> 512 with zeros (exact: ReLU(0)=0 and the padded W2 rows are zero)
    and casts matmul operands to bf16.
    """
    w1_p = jnp.zeros((IN_FEATURES, H1_PAD), jnp.bfloat16)
    w1_p = w1_p.at[:, :HIDDEN_1].set(w1.astype(jnp.bfloat16))
    b1_p = jnp.zeros((1, H1_PAD), jnp.float32).at[0, :HIDDEN_1].set(b1.reshape(-1))
    w2_p = jnp.zeros((H1_PAD, HIDDEN_2), jnp.bfloat16)
    w2_p = w2_p.at[:HIDDEN_1, :].set(w2.astype(jnp.bfloat16))
    b2_p = b2.reshape(1, HIDDEN_2).astype(jnp.float32)
    return w1_p, b1_p, w2_p, b2_p


def _choose_batch_tile(batch):
    """Pick the batch tile. Large batches tile at _MAX_TB; mid-size batches split into
    two tiles so both v7x TensorCores get work; tiny batches use one exact block."""
    if batch >= _MAX_TB:
        return _MAX_TB
    if batch >= 2 * _SUBLANE:
        return _round_up(pl.cdiv(batch, 2), _SUBLANE)
    return batch          # single block equal to the full (small) batch dim — always legal


def layer1_forward(img, w1_p, b1_p, w2_p, b2_p, out_dtype=jnp.float32):
    """JAX wrapper mirroring Layer1.forward.

    img: any array whose trailing dims flatten to 784 (e.g. (B, 1, 28, 28) NCHW).
    Params must come from prepare_params().  Returns (B, 1000) in out_dtype (default f32).
    """
    x = img.reshape(-1, IN_FEATURES)          # == img.view(-1, 28*28); no pad, no cast here
    batch = x.shape[0]
    if batch == 0:
        raise ValueError("layer1_forward: empty batch")

    tb = _choose_batch_tile(batch)
    grid_b = pl.cdiv(batch, tb)

    out = pl.pallas_call(
        _layer1_kernel,
        out_shape=jax.ShapeDtypeStruct((batch, HIDDEN_2), out_dtype),
        grid_spec=pltpu.PrefetchScalarGridSpec(
            num_scalar_prefetch=0,
            grid=(grid_b,),
            in_specs=[
                pl.BlockSpec((tb, IN_FEATURES), lambda i: (i, 0)),   # x: tiled over batch
                pl.BlockSpec((IN_FEATURES, H1_PAD), lambda i: (0, 0)),  # W1: VMEM-resident
                pl.BlockSpec((1, H1_PAD), lambda i: (0, 0)),            # b1: VMEM-resident
                pl.BlockSpec((H1_PAD, HIDDEN_2), lambda i: (0, 0)),     # W2: VMEM-resident
                pl.BlockSpec((1, HIDDEN_2), lambda i: (0, 0)),          # b2: VMEM-resident
            ],
            out_specs=pl.BlockSpec((tb, HIDDEN_2), lambda i: (i, 0)),
        ),
        compiler_params=pltpu.CompilerParams(
            dimension_semantics=("parallel",),   # batch axis: megacore-shardable on v7x
            vmem_limit_bytes=32 << 20,           # TB=512 needs ~16-20 MiB incl. double buffers
        ),
    )(x, w1_p, b1_p, w2_p, b2_p)

    return out


def init_params(key):
    """Deterministic init matching nn.Linear's default (Kaiming-uniform-ish)."""
    k1, k2, k3, k4 = jax.random.split(key, 4)
    bound1 = 1.0 / math.sqrt(IN_FEATURES)
    bound2 = 1.0 / math.sqrt(HIDDEN_1)
    # Stored transposed vs. torch (out, in) -> here (in, out) for x @ W.
    w1 = jax.random.uniform(k1, (IN_FEATURES, HIDDEN_1), jnp.float32, -bound1, bound1)
    b1 = jax.random.uniform(k2, (HIDDEN_1,), jnp.float32, -bound1, bound1)
    w2 = jax.random.uniform(k3, (HIDDEN_1, HIDDEN_2), jnp.float32, -bound2, bound2)
    b2 = jax.random.uniform(k4, (HIDDEN_2,), jnp.float32, -bound2, bound2)
    return w1, b1, w2, b2


if __name__ == "__main__":
    key = jax.random.PRNGKey(0)
    k_img, k_params = jax.random.split(key)

    # Small MNIST-like batch: (batch=2, channels=1, 28, 28) NCHW.
    img = jax.random.normal(k_img, (2, 1, 28, 28), jnp.float32)
    w1, b1, w2, b2 = init_params(k_params)

    # Weight prep happens once, outside the hot path.
    params = prepare_params(w1, b1, w2, b2)

    fwd = jax.jit(layer1_forward)
    out = fwd(img, *params)
    out = jax.block_until_ready(out)

    # Sanity check vs. a pure-JAX f32 reference (loose tol: matmuls run in bf16).
    x = img.reshape(-1, IN_FEATURES)
    ref = jnp.maximum(jnp.maximum(x @ w1 + b1, 0.0) @ w2 + b2, 0.0)
    assert out.shape == (2, HIDDEN_2)
    assert out.dtype == jnp.float32
    assert jnp.allclose(out, ref, atol=5e-2, rtol=5e-2)

    print("KERNEL_OK")
</pallas_src>

<mosaic_0001>
module attributes {stable_mosaic.version = 11 : i64} {
  func.func @_layer1_kernel(%arg0: i32, %arg1: memref<2x784xf32, #tpu.memory_space<vmem>>, %arg2: memref<784x512xbf16, #tpu.memory_space<vmem>>, %arg3: memref<1x512xf32, #tpu.memory_space<vmem>>, %arg4: memref<512x1000xbf16, #tpu.memory_space<vmem>>, %arg5: memref<1x1000xf32, #tpu.memory_space<vmem>>, %arg6: memref<2x1000xf32, #tpu.memory_space<vmem>>) attributes {dimension_semantics = [#tpu.dimension_semantics<parallel>], iteration_bounds = array<i64: 1>, scalar_prefetch = 0 : i64, scratch_operands = 0 : i64, tpu.core_type = #tpu.core_type<tc>, window_params = [{transform_indices = @transform_0, window_bounds = array<i64: 2, 784>}, {pipeline_mode = #tpu.pipeline_mode<synchronous>, transform_indices = @transform_1, window_bounds = array<i64: 784, 512>}, {pipeline_mode = #tpu.pipeline_mode<synchronous>, transform_indices = @transform_2, window_bounds = array<i64: 1, 512>}, {pipeline_mode = #tpu.pipeline_mode<synchronous>, transform_indices = @transform_3, window_bounds = array<i64: 512, 1000>}, {pipeline_mode = #tpu.pipeline_mode<synchronous>, transform_indices = @transform_4, window_bounds = array<i64: 1, 1000>}, {transform_indices = @transform_5, window_bounds = array<i64: 2, 1000>}]} {
    %c0 = arith.constant 0 : index
    %c0_0 = arith.constant 0 : index
    %0 = vector.load %arg1[%c0, %c0_0] : memref<2x784xf32, #tpu.memory_space<vmem>>, vector<2x784xf32>
    %1 = arith.truncf %0 : vector<2x784xf32> to vector<2x784xbf16>
    %c0_1 = arith.constant 0 : index
    %c0_2 = arith.constant 0 : index
    %2 = vector.load %arg2[%c0_1, %c0_2] : memref<784x512xbf16, #tpu.memory_space<vmem>>, vector<784x512xbf16>
    %cst = arith.constant dense<0.000000e+00> : vector<2x512xf32>
    %3 = tpu.matmul %1, %2, %cst {dimension_numbers = #tpu.dot_dimension_numbers<[1], [0], [0], [1], [0, 0, 1, 1], [], []>} : vector<2x784xbf16>, vector<784x512xbf16>, vector<2x512xf32> -> vector<2x512xf32>
    %c0_3 = arith.constant 0 : index
    %c0_4 = arith.constant 0 : index
    %4 = vector.load %arg3[%c0_3, %c0_4] : memref<1x512xf32, #tpu.memory_space<vmem>>, vector<1x512xf32>
    %5 = vector.broadcast %4 : vector<1x512xf32> to vector<2x512xf32>
    %6 = arith.addf %3, %5 : vector<2x512xf32>
    %cst_5 = arith.constant 0.000000e+00 : f32
    %7 = vector.broadcast %cst_5 : f32 to vector<2x512xf32>
    %8 = arith.maximumf %6, %7 : vector<2x512xf32>
    %9 = arith.truncf %8 : vector<2x512xf32> to vector<2x512xbf16>
    %c0_6 = arith.constant 0 : index
    %c0_7 = arith.constant 0 : index
    %10 = vector.load %arg4[%c0_6, %c0_7] : memref<512x1000xbf16, #tpu.memory_space<vmem>>, vector<512x1000xbf16>
    %cst_8 = arith.constant dense<0.000000e+00> : vector<2x1000xf32>
    %11 = tpu.matmul %9, %10, %cst_8 {dimension_numbers = #tpu.dot_dimension_numbers<[1], [0], [0], [1], [0, 0, 1, 1], [], []>} : vector<2x512xbf16>, vector<512x1000xbf16>, vector<2x1000xf32> -> vector<2x1000xf32>
    %c0_9 = arith.constant 0 : index
    %c0_10 = arith.constant 0 : index
    %12 = vector.load %arg5[%c0_9, %c0_10] : memref<1x1000xf32, #tpu.memory_space<vmem>>, vector<1x1000xf32>
    %13 = vector.broadcast %12 : vector<1x1000xf32> to vector<2x1000xf32>
    %14 = arith.addf %11, %13 : vector<2x1000xf32>
    %cst_11 = arith.constant 0.000000e+00 : f32
    %15 = vector.broadcast %cst_11 : f32 to vector<2x1000xf32>
    %16 = arith.maximumf %14, %15 : vector<2x1000xf32>
    %c0_12 = arith.constant 0 : index
    %c0_13 = arith.constant 0 : index
    %17 = vector.load %arg6[%c0_12, %c0_13] : memref<2x1000xf32, #tpu.memory_space<vmem>>, vector<2x1000xf32>
    tpu.vector_store %arg6[%c0_12, %c0_13], %16 {strides = array<i32>} : memref<2x1000xf32, #tpu.memory_space<vmem>>, vector<2x1000xf32>,
    return
  }
  func.func @transform_0(%arg0: i32) -> (i32, i32) {
    %c0_i32 = arith.constant 0 : i32
    %c0_i32_0 = arith.constant 0 : i32
    return %arg0, %c0_i32 : i32, i32
  }
  func.func @transform_1(%arg0: i32) -> (i32, i32) {
    %c0_i32 = arith.constant 0 : i32
    %c0_i32_0 = arith.constant 0 : i32
    %c0_i32_1 = arith.constant 0 : i32
    return %c0_i32, %c0_i32_0 : i32, i32
  }
  func.func @transform_2(%arg0: i32) -> (i32, i32) {
    %c0_i32 = arith.constant 0 : i32
    %c0_i32_0 = arith.constant 0 : i32
    %c0_i32_1 = arith.constant 0 : i32
    return %c0_i32, %c0_i32_0 : i32, i32
  }
  func.func @transform_3(%arg0: i32) -> (i32, i32) {
    %c0_i32 = arith.constant 0 : i32
    %c0_i32_0 = arith.constant 0 : i32
    %c0_i32_1 = arith.constant 0 : i32
    return %c0_i32, %c0_i32_0 : i32, i32
  }
  func.func @transform_4(%arg0: i32) -> (i32, i32) {
    %c0_i32 = arith.constant 0 : i32
    %c0_i32_0 = arith.constant 0 : i32
    %c0_i32_1 = arith.constant 0 : i32
    return %c0_i32, %c0_i32_0 : i32, i32
  }
  func.func @transform_5(%arg0: i32) -> (i32, i32) {
    %c0_i32 = arith.constant 0 : i32
    %c0_i32_0 = arith.constant 0 : i32
    return %arg0, %c0_i32 : i32, i32
  }
}

</mosaic_0001>

<llo_original>
// kernel: layer1_forward.1
$region0: #{layer1_forward.1}
  #allocation0 [shape = 'u32[]', space=smem, size = 0x4, offset = 0x4, fixed_abs, tag = 'smem constant byte address 0x4 - core index']
  #allocation1 [shape = 'u32[144,128]{1,0:T(1,128)}', space=vmem, size = 0x12000, scoped, tag = 'internal scratch']
  %s0 = inlined_call_operand.vmem [shape: f32[2,784], index: 0, kind: input, shape index: {}]
  %s1 = inlined_call_operand.vmem [shape: bf16[784,512], index: 1, kind: input, shape index: {}]
  %s2 = inlined_call_operand.vmem [shape: f32[1,512], index: 2, kind: input, shape index: {}]
  %s3 = inlined_call_operand.vmem [shape: bf16[512,1000], index: 3, kind: input, shape index: {}]
  %s4 = inlined_call_operand.vmem [shape: f32[1,1000], index: 4, kind: input, shape index: {}]
  %s5 = inlined_call_operand.hbm [shape: f32[2,1000], index: 5, kind: output, shape index: {}]
  %s6 = sld [smem:[#allocation0]]
  $region30: #{layer1_forward.1} parent=0
    _
  %s8 = ssub.s32 1, %s6
  %s9 = scalar_select 0, %s8, %s6
  $region1: #{layer1_forward.1} parent=0
    #allocation2 [shape = 'u8[8192]{0}', space=vmem, size = 0x2000, scoped, tag = 'output window, operand 0, single buffered']
    #allocation3 [shape = 's32[1]{0}', space=sflag, size = 0x4, scoped, tag = 'scoped memory for layer1_forward.1']
    %10 = vsyncpa [#allocation3], 0
    // Predicated region
    $region2: #{layer1_forward.1} parent=1 // pred_check
      _
    $region3: #{layer1_forward.1} parent=1 // pred_check_branch
      %12 = sbr.rel (0) target = $region5
    $region4: #{layer1_forward.1} parent=1 // pred_region
      _
    $region5: #{layer1_forward.1} parent=1 // pred_fallthru
      _
    // Predicated region
    $region6: #{layer1_forward.1} parent=1 // pred_check
      _
    $region7: #{layer1_forward.1} parent=1 // pred_check_branch
      %14 = sbr.rel (0) target = $region9
    $region8: #{layer1_forward.1} parent=1 // pred_region
      _
    $region9: #{layer1_forward.1} parent=1 // pred_fallthru
      _
    // Predicated region
    $region10: #{layer1_forward.1} parent=1 // pred_check
      _
    $region11: #{layer1_forward.1} parent=1 // pred_check_branch
      %16 = sbr.rel (0) target = $region13
    $region12: #{layer1_forward.1} parent=1 // pred_region
      _
    $region13: #{layer1_forward.1} parent=1 // pred_fallthru
      _
    // Predicated region
    $region14: #{layer1_forward.1} parent=1 // pred_check
      _
    $region15: #{layer1_forward.1} parent=1 // pred_check_branch
      %18 = sbr.rel (0) target = $region17
    $region16: #{layer1_forward.1} parent=1 // pred_region
      _
    $region17: #{layer1_forward.1} parent=1 // pred_fallthru
      _
    // Predicated region
    $region18: #{layer1_forward.1} parent=1 // pred_check
      _
    $region19: #{layer1_forward.1} parent=1 // pred_check_branch
      %20 = sbr.rel (0) target = $region21
    $region20: #{layer1_forward.1} parent=1 // pred_region
      _
    $region21: #{layer1_forward.1} parent=1 // pred_fallthru
      _
    %v22 = vld [vmem:[%s0] sm:$0xff]
    %v23 = vld [vmem:[%s0 + $0x8] sm:$0x3f]
    %v26 = vcombine.high %v22, %v22
    %v28 = vunpack.c.l.s4 1983009808
    %v29 = vunpack.c.0.s8 %v28
    %v30 = vlaneseq
    %v31 = vshrl.u32 %v30, 7
    %v32 = vsub.s32 %v29, %v31
    %v33 = vrot.slane %v22, %v32
    %v35 = vunpack.c.l.s4 1983009808
    %v36 = vunpack.c.0.s8 %v35
    %v37 = vlaneseq
    %v38 = vshrl.u32 %v37, 7
    %v39 = vsub.s32 %v36, %v38
    %v40 = vrot.slane %v26, %v39
    %v41 = vcombine.high %v33, %v33
    %v42 = vcombine.high %v40, %v40
    %v43 = vcombine.high %v23, %v23
    %v45 = vunpack.c.l.s4 1983009808
    %v46 = vunpack.c.0.s8 %v45
    %v47 = vlaneseq
    %v48 = vshrl.u32 %v47, 7
    %v49 = vsub.s32 %v46, %v48
    %v50 = vrot.slane %v23, %v49
    %v52 = vunpack.c.l.s4 1983009808
    %v53 = vunpack.c.0.s8 %v52
    %v54 = vlaneseq
    %v55 = vshrl.u32 %v54, 7
    %v56 = vsub.s32 %v53, %v55
    %v57 = vrot.slane %v43, %v56
    %v58 = vcombine.high %v50, %v50
    %v66 = vpack.c.bf16 %v33, %v33
    %v67 = vpack.c.bf16 %v41, %v41
    %v68 = vpack.c.bf16 %v40, %v40
    %v69 = vpack.c.bf16 %v42, %v42
    %v70 = vpack.c.bf16 %v50, %v50
    %v71 = vpack.c.bf16 %v58, %v58
    %v72 = vpack.c.bf16 %v57, %v57
    %v73 = vld [vmem:[%s1] sm:$0xff]
    %v74 = vld [vmem:[%s1 + $0x8] sm:$0xff]
    %v75 = vld [vmem:[%s1 + $0x10] sm:$0xff]
    %v76 = vld [vmem:[%s1 + $0x18] sm:$0xff]
    %v77 = vld [vmem:[%s1 + $0x20] sm:$0xff]
    %v78 = vld [vmem:[%s1 + $0x28] sm:$0xff]
    %v79 = vld [vmem:[%s1 + $0x30] sm:$0xff]
    %v80 = vld [vmem:[%s1 + $0x38] sm:$0xff]
    %v81 = vld [vmem:[%s1 + $0x40] sm:$0xff]
    %v82 = vld [vmem:[%s1 + $0x48] sm:$0xff]
    %v83 = vld [vmem:[%s1 + $0x50] sm:$0xff]
    %v84 = vld [vmem:[%s1 + $0x58] sm:$0xff]
    %v85 = vld [vmem:[%s1 + $0x60] sm:$0xff]
    %v86 = vld [vmem:[%s1 + $0x68] sm:$0xff]
    %v87 = vld [vmem:[%s1 + $0x70] sm:$0xff]
    %v88 = vld [vmem:[%s1 + $0x78] sm:$0xff]
    %v89 = vld [vmem:[%s1 + $0x80] sm:$0xff]
    %v90 = vld [vmem:[%s1 + $0x88] sm:$0xff]
    %v91 = vld [vmem:[%s1 + $0x90] sm:$0xff]
    %v92 = vld [vmem:[%s1 + $0x98] sm:$0xff]
    %v93 = vld [vmem:[%s1 + $0xa0] sm:$0xff]
    %v94 = vld [vmem:[%s1 + $0xa8] sm:$0xff]
    %v95 = vld [vmem:[%s1 + $0xb0] sm:$0xff]
    %v96 = vld [vmem:[%s1 + $0xb8] sm:$0xff]
    %v97 = vld [vmem:[%s1 + $0xc0] sm:$0xff]
    %v98 = vld [vmem:[%s1 + $0xc8] sm:$0xff]
    %v99 = vld [vmem:[%s1 + $0xd0] sm:$0xff]
    %v100 = vld [vmem:[%s1 + $0xd8] sm:$0xff]
    %v101 = vld [vmem:[%s1 + $0xe0] sm:$0xff]
    %v102 = vld [vmem:[%s1 + $0xe8] sm:$0xff]
    %v103 = vld [vmem:[%s1 + $0xf0] sm:$0xff]
    %v104 = vld [vmem:[%s1 + $0xf8] sm:$0xff]
    %v105 = vld [vmem:[%s1 + $0x100] sm:$0xff]
    %v106 = vld [vmem:[%s1 + $0x108] sm:$0xff]
    %v107 = vld [vmem:[%s1 + $0x110] sm:$0xff]
    %v108 = vld [vmem:[%s1 + $0x118] sm:$0xff]
    %v109 = vld [vmem:[%s1 + $0x120] sm:$0xff]
    %v110 = vld [vmem:[%s1 + $0x128] sm:$0xff]
    %v111 = vld [vmem:[%s1 + $0x130] sm:$0xff]
    %v112 = vld [vmem:[%s1 + $0x138] sm:$0xff]
    %v113 = vld [vmem:[%s1 + $0x140] sm:$0xff]
    %v114 = vld [vmem:[%s1 + $0x148] sm:$0xff]
    %v115 = vld [vmem:[%s1 + $0x150] sm:$0xff]
    %v116 = vld [vmem:[%s1 + $0x158] sm:$0xff]
    %v117 = vld [vmem:[%s1 + $0x160] sm:$0xff]
    %v118 = vld [vmem:[%s1 + $0x168] sm:$0xff]
    %v119 = vld [vmem:[%s1 + $0x170] sm:$0xff]
    %v120 = vld [vmem:[%s1 + $0x178] sm:$0xff]
    %v121 = vld [vmem:[%s1 + $0x180] sm:$0xff]
    %v122 = vld [vmem:[%s1 + $0x188] sm:$0xff]
    %v123 = vld [vmem:[%s1 + $0x190] sm:$0xff]
    %v124 = vld [vmem:[%s1 + $0x198] sm:$0xff]
    %v125 = vld [vmem:[%s1 + $0x1a0] sm:$0xff]
    %v126 = vld [vmem:[%s1 + $0x1a8] sm:$0xff]
    %v127 = vld [vmem:[%s1 + $0x1b0] sm:$0xff]
    %v128 = vld [vmem:[%s1 + $0x1b8] sm:$0xff]
    %v129 = vld [vmem:[%s1 + $0x1c0] sm:$0xff]
    %v130 = vld [vmem:[%s1 + $0x1c8] sm:$0xff]
    %v131 = vld [vmem:[%s1 + $0x1d0] sm:$0xff]
    %v132 = vld [vmem:[%s1 + $0x1d8] sm:$0xff]
    %v133 = vld [vmem:[%s1 + $0x1e0] sm:$0xff]
    %v134 = vld [vmem:[%s1 + $0x1e8] sm:$0xff]
    %v135 = vld [vmem:[%s1 + $0x1f0] sm:$0xff]
    %v136 = vld [vmem:[%s1 + $0x1f8] sm:$0xff]
    %v137 = vld [vmem:[%s1 + $0x200] sm:$0xff]
    %v138 = vld [vmem:[%s1 + $0x208] sm:$0xff]
    %v139 = vld [vmem:[%s1 + $0x210] sm:$0xff]
    %v140 = vld [vmem:[%s1 + $0x218] sm:$0xff]
    %v141 = vld [vmem:[%s1 + $0x220] sm:$0xff]
    %v142 = vld [vmem:[%s1 + $0x228] sm:$0xff]
    %v143 = vld [vmem:[%s1 + $0x230] sm:$0xff]
    %v144 = vld [vmem:[%s1 + $0x238] sm:$0xff]
    %v145 = vld [vmem:[%s1 + $0x240] sm:$0xff]
    %v146 = vld [vmem:[%s1 + $0x248] sm:$0xff]
    %v147 = vld [vmem:[%s1 + $0x250] sm:$0xff]
    %v148 = vld [vmem:[%s1 + $0x258] sm:$0xff]
    %v149 = vld [vmem:[%s1 + $0x260] sm:$0xff]
    %v150 = vld [vmem:[%s1 + $0x268] sm:$0xff]
    %v151 = vld [vmem:[%s1 + $0x270] sm:$0xff]
    %v152 = vld [vmem:[%s1 + $0x278] sm:$0xff]
    %v153 = vld [vmem:[%s1 + $0x280] sm:$0xff]
    %v154 = vld [vmem:[%s1 + $0x288] sm:$0xff]
    %v155 = vld [vmem:[%s1 + $0x290] sm:$0xff]
    %v156 = vld [vmem:[%s1 + $0x298] sm:$0xff]
    %v157 = vld [vmem:[%s1 + $0x2a0] sm:$0xff]
    %v158 = vld [vmem:[%s1 + $0x2a8] sm:$0xff]
    %v159 = vld [vmem:[%s1 + $0x2b0] sm:$0xff]
    %v160 = vld [vmem:[%s1 + $0x2b8] sm:$0xff]
    %v161 = vld [vmem:[%s1 + $0x2c0] sm:$0xff]
    %v162 = vld [vmem:[%s1 + $0x2c8] sm:$0xff]
    %v163 = vld [vmem:[%s1 + $0x2d0] sm:$0xff]
    %v164 = vld [vmem:[%s1 + $0x2d8] sm:$0xff]
    %v165 = vld [vmem:[%s1 + $0x2e0] sm:$0xff]
    %v166 = vld [vmem:[%s1 + $0x2e8] sm:$0xff]
    %v167 = vld [vmem:[%s1 + $0x2f0] sm:$0xff]
    %v168 = vld [vmem:[%s1 + $0x2f8] sm:$0xff]
    %v169 = vld [vmem:[%s1 + $0x300] sm:$0xff]
    %v170 = vld [vmem:[%s1 + $0x308] sm:$0xff]
    %v171 = vld [vmem:[%s1 + $0x310] sm:$0xff]
    %v172 = vld [vmem:[%s1 + $0x318] sm:$0xff]
    %v173 = vld [vmem:[%s1 + $0x320] sm:$0xff]
    %v174 = vld [vmem:[%s1 + $0x328] sm:$0xff]
    %v175 = vld [vmem:[%s1 + $0x330] sm:$0xff]
    %v176 = vld [vmem:[%s1 + $0x338] sm:$0xff]
    %v177 = vld [vmem:[%s1 + $0x340] sm:$0xff]
    %v178 = vld [vmem:[%s1 + $0x348] sm:$0xff]
    %v179 = vld [vmem:[%s1 + $0x350] sm:$0xff]
    %v180 = vld [vmem:[%s1 + $0x358] sm:$0xff]
    %v181 = vld [vmem:[%s1 + $0x360] sm:$0xff]
    %v182 = vld [vmem:[%s1 + $0x368] sm:$0xff]
    %v183 = vld [vmem:[%s1 + $0x370] sm:$0xff]
    %v184 = vld [vmem:[%s1 + $0x378] sm:$0xff]
    %v185 = vld [vmem:[%s1 + $0x380] sm:$0xff]
    %v186 = vld [vmem:[%s1 + $0x388] sm:$0xff]
    %v187 = vld [vmem:[%s1 + $0x390] sm:$0xff]
    %v188 = vld [vmem:[%s1 + $0x398] sm:$0xff]
    %v189 = vld [vmem:[%s1 + $0x3a0] sm:$0xff]
    %v190 = vld [vmem:[%s1 + $0x3a8] sm:$0xff]
    %v191 = vld [vmem:[%s1 + $0x3b0] sm:$0xff]
    %v192 = vld [vmem:[%s1 + $0x3b8] sm:$0xff]
    %v193 = vld [vmem:[%s1 + $0x3c0] sm:$0xff]
    %v194 = vld [vmem:[%s1 + $0x3c8] sm:$0xff]
    %v195 = vld [vmem:[%s1 + $0x3d0] sm:$0xff]
    %v196 = vld [vmem:[%s1 + $0x3d8] sm:$0xff]
    %v197 = vld [vmem:[%s1 + $0x3e0] sm:$0xff]
    %v198 = vld [vmem:[%s1 + $0x3e8] sm:$0xff]
    %v199 = vld [vmem:[%s1 + $0x3f0] sm:$0xff]
    %v200 = vld [vmem:[%s1 + $0x3f8] sm:$0xff]
    %v201 = vld [vmem:[%s1 + $0x400] sm:$0xff]
    %v202 = vld [vmem:[%s1 + $0x408] sm:$0xff]
    %v203 = vld [vmem:[%s1 + $0x410] sm:$0xff]
    %v204 = vld [vmem:[%s1 + $0x418] sm:$0xff]
    %v205 = vld [vmem:[%s1 + $0x420] sm:$0xff]
    %v206 = vld [vmem:[%s1 + $0x428] sm:$0xff]
    %v207 = vld [vmem:[%s1 + $0x430] sm:$0xff]
    %v208 = vld [vmem:[%s1 + $0x438] sm:$0xff]
    %v209 = vld [vmem:[%s1 + $0x440] sm:$0xff]
    %v210 = vld [vmem:[%s1 + $0x448] sm:$0xff]
    %v211 = vld [vmem:[%s1 + $0x450] sm:$0xff]
    %v212 = vld [vmem:[%s1 + $0x458] sm:$0xff]
    %v213 = vld [vmem:[%s1 + $0x460] sm:$0xff]
    %v214 = vld [vmem:[%s1 + $0x468] sm:$0xff]
    %v215 = vld [vmem:[%s1 + $0x470] sm:$0xff]
    %v216 = vld [vmem:[%s1 + $0x478] sm:$0xff]
    %v217 = vld [vmem:[%s1 + $0x480] sm:$0xff]
    %v218 = vld [vmem:[%s1 + $0x488] sm:$0xff]
    %v219 = vld [vmem:[%s1 + $0x490] sm:$0xff]
    %v220 = vld [vmem:[%s1 + $0x498] sm:$0xff]
    %v221 = vld [vmem:[%s1 + $0x4a0] sm:$0xff]
    %v222 = vld [vmem:[%s1 + $0x4a8] sm:$0xff]
    %v223 = vld [vmem:[%s1 + $0x4b0] sm:$0xff]
    %v224 = vld [vmem:[%s1 + $0x4b8] sm:$0xff]
    %v225 = vld [vmem:[%s1 + $0x4c0] sm:$0xff]
    %v226 = vld [vmem:[%s1 + $0x4c8] sm:$0xff]
    %v227 = vld [vmem:[%s1 + $0x4d0] sm:$0xff]
    %v228 = vld [vmem:[%s1 + $0x4d8] sm:$0xff]
    %v229 = vld [vmem:[%s1 + $0x4e0] sm:$0xff]
    %v230 = vld [vmem:[%s1 + $0x4e8] sm:$0xff]
    %v231 = vld [vmem:[%s1 + $0x4f0] sm:$0xff]
    %v232 = vld [vmem:[%s1 + $0x4f8] sm:$0xff]
    %v233 = vld [vmem:[%s1 + $0x500] sm:$0xff]
    %v234 = vld [vmem:[%s1 + $0x508] sm:$0xff]
    %v235 = vld [vmem:[%s1 + $0x510] sm:$0xff]
    %v236 = vld [vmem:[%s1 + $0x518] sm:$0xff]
    %v237 = vld [vmem:[%s1 + $0x520] sm:$0xff]
    %v238 = vld [vmem:[%s1 + $0x528] sm:$0xff]
    %v239 = vld [vmem:[%s1 + $0x530] sm:$0xff]
    %v240 = vld [vmem:[%s1 + $0x538] sm:$0xff]
    %v241 = vld [vmem:[%s1 + $0x540] sm:$0xff]
    %v242 = vld [vmem:[%s1 + $0x548] sm:$0xff]
    %v243 = vld [vmem:[%s1 + $0x550] sm:$0xff]
    %v244 = vld [vmem:[%s1 + $0x558] sm:$0xff]
    %v245 = vld [vmem:[%s1 + $0x560] sm:$0xff]
    %v246 = vld [vmem:[%s1 + $0x568] sm:$0xff]
    %v247 = vld [vmem:[%s1 + $0x570] sm:$0xff]
    %v248 = vld [vmem:[%s1 + $0x578] sm:$0xff]
    %v249 = vld [vmem:[%s1 + $0x580] sm:$0xff]
    %v250 = vld [vmem:[%s1 + $0x588] sm:$0xff]
    %v251 = vld [vmem:[%s1 + $0x590] sm:$0xff]
    %v252 = vld [vmem:[%s1 + $0x598] sm:$0xff]
    %v253 = vld [vmem:[%s1 + $0x5a0] sm:$0xff]
    %v254 = vld [vmem:[%s1 + $0x5a8] sm:$0xff]
    %v255 = vld [vmem:[%s1 + $0x5b0] sm:$0xff]
    %v256 = vld [vmem:[%s1 + $0x5b8] sm:$0xff]
    %v257 = vld [vmem:[%s1 + $0x5c0] sm:$0xff]
    %v258 = vld [vmem:[%s1 + $0x5c8] sm:$0xff]
    %v259 = vld [vmem:[%s1 + $0x5d0] sm:$0xff]
    %v260 = vld [vmem:[%s1 + $0x5d8] sm:$0xff]
    %v261 = vld [vmem:[%s1 + $0x5e0] sm:$0xff]
    %v262 = vld [vmem:[%s1 + $0x5e8] sm:$0xff]
    %v263 = vld [vmem:[%s1 + $0x5f0] sm:$0xff]
    %v264 = vld [vmem:[%s1 + $0x5f8] sm:$0xff]
    %v265 = vld [vmem:[%s1 + $0x600] sm:$0xff]
    %v266 = vld [vmem:[%s1 + $0x608] sm:$0xff]
    %v267 = vld [vmem:[%s1 + $0x610] sm:$0xff]
    %v268 = vld [vmem:[%s1 + $0x618] sm:$0xff]
    %v269 = vld [vmem:[%s2] sm:$0xf]
    %v271 = vlaneseq
    %v272 = vshrl.u32 %v271, 7
    %v273 = vsub.s32 0, %v272
    %v274 = vrot.slane %v269, %v273
    %v275 = vlaneseq
    %v276 = vshrl.u32 %v275, 7
    %v277 = vsub.s32 1, %v276
    %v278 = vrot.slane %v269, %v277
    %v279 = vlaneseq
    %v280 = vshrl.u32 %v279, 7
    %v281 = vsub.s32 2, %v280
    %v282 = vrot.slane %v269, %v281
    %v283 = vlaneseq
    %v284 = vshrl.u32 %v283, 7
    %v285 = vsub.s32 3, %v284
    %v286 = vrot.slane %v269, %v285
    %v487 = vunpack.c.l.b16 %v73
    %v488 = vunpack.c.h.b16 %v73
    %v489 = vunpack.c.l.b16 %v74
    %v490 = vunpack.c.h.b16 %v74
    %v491 = vunpack.c.l.b16 %v75
    %v492 = vunpack.c.h.b16 %v75
    %v493 = vunpack.c.l.b16 %v76
    %v494 = vunpack.c.h.b16 %v76
    %v495 = vunpack.c.l.b16 %v77
    %v496 = vunpack.c.h.b16 %v77
    %v497 = vunpack.c.l.b16 %v78
    %v498 = vunpack.c.h.b16 %v78
    %v499 = vunpack.c.l.b16 %v79
    %v500 = vunpack.c.h.b16 %v79
    %v501 = vunpack.c.l.b16 %v80
    %v502 = vunpack.c.h.b16 %v80
    %v503 = vunpack.c.l.b16 %v81
    %v504 = vunpack.c.h.b16 %v81
    %v505 = vunpack.c.l.b16 %v82
    %v506 = vunpack.c.h.b16 %v82
    %v507 = vunpack.c.l.b16 %v83
    %v508 = vunpack.c.h.b16 %v83
    %v509 = vunpack.c.l.b16 %v84
    %v510 = vunpack.c.h.b16 %v84
    %v511 = vunpack.c.l.b16 %v85
    %v512 = vunpack.c.h.b16 %v85
    %v513 = vunpack.c.l.b16 %v86
    %v514 = vunpack.c.h.b16 %v86
    %v515 = vunpack.c.l.b16 %v87
    %v516 = vunpack.c.h.b16 %v87
    %v517 = vunpack.c.l.b16 %v88
    %v518 = vunpack.c.h.b16 %v88
    %v519 = vunpack.c.l.b16 %v89
    %v520 = vunpack.c.h.b16 %v89
    %v521 = vunpack.c.l.b16 %v90
    %v522 = vunpack.c.h.b16 %v90
    %v523 = vunpack.c.l.b16 %v91
    %v524 = vunpack.c.h.b16 %v91
    %v525 = vunpack.c.l.b16 %v92
    %v526 = vunpack.c.h.b16 %v92
    %v527 = vunpack.c.l.b16 %v93
    %v528 = vunpack.c.h.b16 %v93
    %v529 = vunpack.c.l.b16 %v94
    %v530 = vunpack.c.h.b16 %v94
    %v531 = vunpack.c.l.b16 %v95
    %v532 = vunpack.c.h.b16 %v95
    %v533 = vunpack.c.l.b16 %v96
    %v534 = vunpack.c.h.b16 %v96
    %v535 = vunpack.c.l.b16 %v97
    %v536 = vunpack.c.h.b16 %v97
    %v537 = vunpack.c.l.b16 %v98
    %v538 = vunpack.c.h.b16 %v98
    %v539 = vunpack.c.l.b16 %v99
    %v540 = vunpack.c.h.b16 %v99
    %v541 = vunpack.c.l.b16 %v100
    %v542 = vunpack.c.h.b16 %v100
    %v543 = vunpack.c.l.b16 %v101
    %v544 = vunpack.c.h.b16 %v101
    %v545 = vunpack.c.l.b16 %v102
    %v546 = vunpack.c.h.b16 %v102
    %v547 = vunpack.c.l.b16 %v103
    %v548 = vunpack.c.h.b16 %v103
    %v549 = vunpack.c.l.b16 %v104
    %v550 = vunpack.c.h.b16 %v104
    %v551 = vunpack.c.l.b16 %v105
    %v552 = vunpack.c.h.b16 %v105
    %v553 = vunpack.c.l.b16 %v106
    %v554 = vunpack.c.h.b16 %v106
    %v555 = vunpack.c.l.b16 %v107
    %v556 = vunpack.c.h.b16 %v107
    %v557 = vunpack.c.l.b16 %v108
    %v558 = vunpack.c.h.b16 %v108
    %v559 = vunpack.c.l.b16 %v109
    %v560 = vunpack.c.h.b16 %v109
    %v561 = vunpack.c.l.b16 %v110
    %v562 = vunpack.c.h.b16 %v110
    %v563 = vunpack.c.l.b16 %v111
    %v564 = vunpack.c.h.b16 %v111
    %v565 = vunpack.c.l.b16 %v112
    %v566 = vunpack.c.h.b16 %v112
    %v567 = vunpack.c.l.b16 %v113
    %v568 = vunpack.c.h.b16 %v113
    %v569 = vunpack.c.l.b16 %v114
    %v570 = vunpack.c.h.b16 %v114
    %v571 = vunpack.c.l.b16 %v115
    %v572 = vunpack.c.h.b16 %v115
    %v573 = vunpack.c.l.b16 %v116
    %v574 = vunpack.c.h.b16 %v116
    %v575 = vunpack.c.l.b16 %v117
    %v576 = vunpack.c.h.b16 %v117
    %v577 = vunpack.c.l.b16 %v118
    %v578 = vunpack.c.h.b16 %v118
    %v579 = vunpack.c.l.b16 %v119
    %v580 = vunpack.c.h.b16 %v119
    %v581 = vunpack.c.l.b16 %v120
    %v582 = vunpack.c.h.b16 %v120
    %v583 = vunpack.c.l.b16 %v121
    %v584 = vunpack.c.h.b16 %v121
    %v585 = vunpack.c.l.b16 %v122
    %v586 = vunpack.c.h.b16 %v122
    %v587 = vunpack.c.l.b16 %v123
    %v588 = vunpack.c.h.b16 %v123
    %v589 = vunpack.c.l.b16 %v124
    %v590 = vunpack.c.h.b16 %v124
    %v591 = vunpack.c.l.b16 %v125
    %v592 = vunpack.c.h.b16 %v125
    %v593 = vunpack.c.l.b16 %v126
    %v594 = vunpack.c.h.b16 %v126
    %v595 = vunpack.c.l.b16 %v127
    %v596 = vunpack.c.h.b16 %v127
    %v597 = vunpack.c.l.b16 %v128
    %v598 = vunpack.c.h.b16 %v128
    %v599 = vunpack.c.l.b16 %v129
    %v600 = vunpack.c.h.b16 %v129
    %v601 = vunpack.c.l.b16 %v130
    %v602 = vunpack.c.h.b16 %v130
    %v603 = vunpack.c.l.b16 %v131
    %v604 = vunpack.c.h.b16 %v131
    %v605 = vunpack.c.l.b16 %v132
    %v606 = vunpack.c.h.b16 %v132
    %v607 = vunpack.c.l.b16 %v133
    %v608 = vunpack.c.h.b16 %v133
    %v609 = vunpack.c.l.b16 %v134
    %v610 = vunpack.c.h.b16 %v134
    %v611 = vunpack.c.l.b16 %v135
    %v612 = vunpack.c.h.b16 %v135
    %v613 = vunpack.c.l.b16 %v136
    %v614 = vunpack.c.h.b16 %v136
    %v615 = vunpack.c.l.b16 %v137
    %v616 = vunpack.c.h.b16 %v137
    %v617 = vunpack.c.l.b16 %v138
    %v618 = vunpack.c.h.b16 %v138
    %v619 = vunpack.c.l.b16 %v139
    %v620 = vunpack.c.h.b16 %v139
    %v621 = vunpack.c.l.b16 %v140
    %v622 = vunpack.c.h.b16 %v140
    %v623 = vunpack.c.l.b16 %v141
    %v624 = vunpack.c.h.b16 %v141
    %v625 = vunpack.c.l.b16 %v142
    %v626 = vunpack.c.h.b16 %v142
    %v627 = vunpack.c.l.b16 %v143
    %v628 = vunpack.c.h.b16 %v143
    %v629 = vunpack.c.l.b16 %v144
    %v630 = vunpack.c.h.b16 %v144
    %v631 = vunpack.c.l.b16 %v145
    %v632 = vunpack.c.h.b16 %v145
    %v633 = vunpack.c.l.b16 %v146
    %v634 = vunpack.c.h.b16 %v146
    %v635 = vunpack.c.l.b16 %v147
    %v636 = vunpack.c.h.b16 %v147
    %v637 = vunpack.c.l.b16 %v148
    %v638 = vunpack.c.h.b16 %v148
    %v639 = vunpack.c.l.b16 %v149
    %v640 = vunpack.c.h.b16 %v149
    %v641 = vunpack.c.l.b16 %v150
    %v642 = vunpack.c.h.b16 %v150
    %v643 = vunpack.c.l.b16 %v151
    %v644 = vunpack.c.h.b16 %v151
    %v645 = vunpack.c.l.b16 %v152
    %v646 = vunpack.c.h.b16 %v152
    %v647 = vunpack.c.l.b16 %v153
    %v648 = vunpack.c.h.b16 %v153
    %v649 = vunpack.c.l.b16 %v154
    %v650 = vunpack.c.h.b16 %v154
    %v651 = vunpack.c.l.b16 %v155
    %v652 = vunpack.c.h.b16 %v155
    %v653 = vunpack.c.l.b16 %v156
    %v654 = vunpack.c.h.b16 %v156
    %v655 = vunpack.c.l.b16 %v157
    %v656 = vunpack.c.h.b16 %v157
    %v657 = vunpack.c.l.b16 %v158
    %v658 = vunpack.c.h.b16 %v158
    %v659 = vunpack.c.l.b16 %v159
    %v660 = vunpack.c.h.b16 %v159
    %v661 = vunpack.c.l.b16 %v160
    %v662 = vunpack.c.h.b16 %v160
    %v663 = vunpack.c.l.b16 %v161
    %v664 = vunpack.c.h.b16 %v161
    %v665 = vunpack.c.l.b16 %v162
    %v666 = vunpack.c.h.b16 %v162
    %v667 = vunpack.c.l.b16 %v163
    %v668 = vunpack.c.h.b16 %v163
    %v669 = vunpack.c.l.b16 %v164
    %v670 = vunpack.c.h.b16 %v164
    %v671 = vunpack.c.l.b16 %v165
    %v672 = vunpack.c.h.b16 %v165
    %v673 = vunpack.c.l.b16 %v166
    %v674 = vunpack.c.h.b16 %v166
    %v675 = vunpack.c.l.b16 %v167
    %v676 = vunpack.c.h.b16 %v167
    %v677 = vunpack.c.l.b16 %v168
    %v678 = vunpack.c.h.b16 %v168
    %v679 = vunpack.c.l.b16 %v169
    %v680 = vunpack.c.h.b16 %v169
    %v681 = vunpack.c.l.b16 %v170
    %v682 = vunpack.c.h.b16 %v170
    %v683 = vunpack.c.l.b16 %v171
    %v684 = vunpack.c.h.b16 %v171
    %v685 = vunpack.c.l.b16 %v172
    %v686 = vunpack.c.h.b16 %v172
    %v687 = vunpack.c.l.b16 %v173
    %v688 = vunpack.c.h.b16 %v173
    %v689 = vunpack.c.l.b16 %v174
    %v690 = vunpack.c.h.b16 %v174
    %v691 = vunpack.c.l.b16 %v175
    %v692 = vunpack.c.h.b16 %v175
    %v693 = vunpack.c.l.b16 %v176
    %v694 = vunpack.c.h.b16 %v176
    %v695 = vunpack.c.l.b16 %v177
    %v696 = vunpack.c.h.b16 %v177
    %v697 = vunpack.c.l.b16 %v178
    %v698 = vunpack.c.h.b16 %v178
    %v699 = vunpack.c.l.b16 %v179
    %v700 = vunpack.c.h.b16 %v179
    %v701 = vunpack.c.l.b16 %v180
    %v702 = vunpack.c.h.b16 %v180
    %v703 = vunpack.c.l.b16 %v181
    %v704 = vunpack.c.h.b16 %v181
    %v705 = vunpack.c.l.b16 %v182
    %v706 = vunpack.c.h.b16 %v182
    %v707 = vunpack.c.l.b16 %v183
    %v708 = vunpack.c.h.b16 %v183
    %v709 = vunpack.c.l.b16 %v184
    %v710 = vunpack.c.h.b16 %v184
    %v711 = vunpack.c.l.b16 %v185
    %v712 = vunpack.c.h.b16 %v185
    %v713 = vunpack.c.l.b16 %v186
    %v714 = vunpack.c.h.b16 %v186
    %v715 = vunpack.c.l.b16 %v187
    %v716 = vunpack.c.h.b16 %v187
    %v717 = vunpack.c.l.b16 %v188
    %v718 = vunpack.c.h.b16 %v188
    %v719 = vunpack.c.l.b16 %v189
    %v720 = vunpack.c.h.b16 %v189
    %v721 = vunpack.c.l.b16 %v190
    %v722 = vunpack.c.h.b16 %v190
    %v723 = vunpack.c.l.b16 %v191
    %v724 = vunpack.c.h.b16 %v191
    %v725 = vunpack.c.l.b16 %v192
    %v726 = vunpack.c.h.b16 %v192
    %v727 = vunpack.c.l.b16 %v193
    %v728 = vunpack.c.h.b16 %v193
    %v729 = vunpack.c.l.b16 %v194
    %v730 = vunpack.c.h.b16 %v194
    %v731 = vunpack.c.l.b16 %v195
    %v732 = vunpack.c.h.b16 %v195
    %v733 = vunpack.c.l.b16 %v196
    %v734 = vunpack.c.h.b16 %v196
    %v735 = vunpack.c.l.b16 %v197
    %v736 = vunpack.c.h.b16 %v197
    %v737 = vunpack.c.l.b16 %v198
    %v738 = vunpack.c.h.b16 %v198
    %v739 = vunpack.c.l.b16 %v199
    %v740 = vunpack.c.h.b16 %v199
    %v741 = vunpack.c.l.b16 %v200
    %v742 = vunpack.c.h.b16 %v200
    %v743 = vunpack.c.l.b16 %v201
    %v744 = vunpack.c.h.b16 %v201
    %v745 = vunpack.c.l.b16 %v202
    %v746 = vunpack.c.h.b16 %v202
    %v747 = vunpack.c.l.b16 %v203
    %v748 = vunpack.c.h.b16 %v203
    %v749 = vunpack.c.l.b16 %v204
    %v750 = vunpack.c.h.b16 %v204
    %v751 = vunpack.c.l.b16 %v205
    %v752 = vunpack.c.h.b16 %v205
    %v753 = vunpack.c.l.b16 %v206
    %v754 = vunpack.c.h.b16 %v206
    %v755 = vunpack.c.l.b16 %v207
    %v756 = vunpack.c.h.b16 %v207
    %v757 = vunpack.c.l.b16 %v208
    %v758 = vunpack.c.h.b16 %v208
    %v759 = vunpack.c.l.b16 %v209
    %v760 = vunpack.c.h.b16 %v209
    %v761 = vunpack.c.l.b16 %v210
    %v762 = vunpack.c.h.b16 %v210
    %v763 = vunpack.c.l.b16 %v211
    %v764 = vunpack.c.h.b16 %v211
    %v765 = vunpack.c.l.b16 %v212
    %v766 = vunpack.c.h.b16 %v212
    %v767 = vunpack.c.l.b16 %v213
    %v768 = vunpack.c.h.b16 %v213
    %v769 = vunpack.c.l.b16 %v214
    %v770 = vunpack.c.h.b16 %v214
    %v771 = vunpack.c.l.b16 %v215
    %v772 = vunpack.c.h.b16 %v215
    %v773 = vunpack.c.l.b16 %v216
    %v774 = vunpack.c.h.b16 %v216
    %v775 = vunpack.c.l.b16 %v217
    %v776 = vunpack.c.h.b16 %v217
    %v777 = vunpack.c.l.b16 %v218
    %v778 = vunpack.c.h.b16 %v218
    %v779 = vunpack.c.l.b16 %v219
    %v780 = vunpack.c.h.b16 %v219
    %v781 = vunpack.c.l.b16 %v220
    %v782 = vunpack.c.h.b16 %v220
    %v783 = vunpack.c.l.b16 %v221
    %v784 = vunpack.c.h.b16 %v221
    %v785 = vunpack.c.l.b16 %v222
    %v786 = vunpack.c.h.b16 %v222
    %v787 = vunpack.c.l.b16 %v223
    %v788 = vunpack.c.h.b16 %v223
    %v789 = vunpack.c.l.b16 %v224
    %v790 = vunpack.c.h.b16 %v224
    %v791 = vunpack.c.l.b16 %v225
    %v792 = vunpack.c.h.b16 %v225
    %v793 = vunpack.c.l.b16 %v226
    %v794 = vunpack.c.h.b16 %v226
    %v795 = vunpack.c.l.b16 %v227
    %v796 = vunpack.c.h.b16 %v227
    %v797 = vunpack.c.l.b16 %v228
    %v798 = vunpack.c.h.b16 %v228
    %v799 = vunpack.c.l.b16 %v229
    %v800 = vunpack.c.h.b16 %v229
    %v801 = vunpack.c.l.b16 %v230
    %v802 = vunpack.c.h.b16 %v230
    %v803 = vunpack.c.l.b16 %v231
    %v804 = vunpack.c.h.b16 %v231
    %v805 = vunpack.c.l.b16 %v232
    %v806 = vunpack.c.h.b16 %v232
    %v807 = vunpack.c.l.b16 %v233
    %v808 = vunpack.c.h.b16 %v233
    %v809 = vunpack.c.l.b16 %v234
    %v810 = vunpack.c.h.b16 %v234
    %v811 = vunpack.c.l.b16 %v235
    %v812 = vunpack.c.h.b16 %v235
    %v813 = vunpack.c.l.b16 %v236
    %v814 = vunpack.c.h.b16 %v236
    %v815 = vunpack.c.l.b16 %v237
    %v816 = vunpack.c.h.b16 %v237
    %v817 = vunpack.c.l.b16 %v238
    %v818 = vunpack.c.h.b16 %v238
    %v819 = vunpack.c.l.b16 %v239
    %v820 = vunpack.c.h.b16 %v239
    %v821 = vunpack.c.l.b16 %v240
    %v822 = vunpack.c.h.b16 %v240
    %v823 = vunpack.c.l.b16 %v241
    %v824 = vunpack.c.h.b16 %v241
    %v825 = vunpack.c.l.b16 %v242
    %v826 = vunpack.c.h.b16 %v242
    %v827 = vunpack.c.l.b16 %v243
    %v828 = vunpack.c.h.b16 %v243
    %v829 = vunpack.c.l.b16 %v244
    %v830 = vunpack.c.h.b16 %v244
    %v831 = vunpack.c.l.b16 %v245
    %v832 = vunpack.c.h.b16 %v245
    %v833 = vunpack.c.l.b16 %v246
    %v834 = vunpack.c.h.b16 %v246
    %v835 = vunpack.c.l.b16 %v247
    %v836 = vunpack.c.h.b16 %v247
    %v837 = vunpack.c.l.b16 %v248
    %v838 = vunpack.c.h.b16 %v248
    %v839 = vunpack.c.l.b16 %v249
    %v840 = vunpack.c.h.b16 %v249
    %v841 = vunpack.c.l.b16 %v250
    %v842 = vunpack.c.h.b16 %v250
    %v843 = vunpack.c.l.b16 %v251
    %v844 = vunpack.c.h.b16 %v251
    %v845 = vunpack.c.l.b16 %v252
    %v846 = vunpack.c.h.b16 %v252
    %v847 = vunpack.c.l.b16 %v253
    %v848 = vunpack.c.h.b16 %v253
    %v849 = vunpack.c.l.b16 %v254
    %v850 = vunpack.c.h.b16 %v254
    %v851 = vunpack.c.l.b16 %v255
    %v852 = vunpack.c.h.b16 %v255
    %v853 = vunpack.c.l.b16 %v256
    %v854 = vunpack.c.h.b16 %v256
    %v855 = vunpack.c.l.b16 %v257
    %v856 = vunpack.c.h.b16 %v257
    %v857 = vunpack.c.l.b16 %v258
    %v858 = vunpack.c.h.b16 %v258
    %v859 = vunpack.c.l.b16 %v259
    %v860 = vunpack.c.h.b16 %v259
    %v861 = vunpack.c.l.b16 %v260
    %v862 = vunpack.c.h.b16 %v260
    %v863 = vunpack.c.l.b16 %v261
    %v864 = vunpack.c.h.b16 %v261
    %v865 = vunpack.c.l.b16 %v262
    %v866 = vunpack.c.h.b16 %v262
    %v867 = vunpack.c.l.b16 %v263
    %v868 = vunpack.c.h.b16 %v263
    %v869 = vunpack.c.l.b16 %v264
    %v870 = vunpack.c.h.b16 %v264
    %v871 = vunpack.c.l.b16 %v265
    %v872 = vunpack.c.h.b16 %v265
    %v873 = vunpack.c.l.b16 %v266
    %v874 = vunpack.c.h.b16 %v266
    %v875 = vunpack.c.l.b16 %v267
    %v876 = vunpack.c.h.b16 %v267
    %v877 = vunpack.c.l.b16 %v268
    %v878 = vunpack.c.h.b16 %v268
    %v879 = vpack.c.b16 %v491, %v487
    %v880 = vpack.c.b16 %v492, %v488
    %v881 = vpack.c.b16 %v493, %v489
    %v882 = vpack.c.b16 %v494, %v490
    %v883 = vpack.c.b16 %v499, %v495
    %v884 = vpack.c.b16 %v500, %v496
    %v885 = vpack.c.b16 %v501, %v497
    %v886 = vpack.c.b16 %v502, %v498
    %v887 = vpack.c.b16 %v507, %v503
    %v888 = vpack.c.b16 %v508, %v504
    %v889 = vpack.c.b16 %v509, %v505
    %v890 = vpack.c.b16 %v510, %v506
    %v891 = vpack.c.b16 %v515, %v511
    %v892 = vpack.c.b16 %v516, %v512
    %v893 = vpack.c.b16 %v517, %v513
    %v894 = vpack.c.b16 %v518, %v514
    %v895 = vpack.c.b16 %v523, %v519
    %v896 = vpack.c.b16 %v524, %v520
    %v897 = vpack.c.b16 %v525, %v521
    %v898 = vpack.c.b16 %v526, %v522
    %v899 = vpack.c.b16 %v531, %v527
    %v900 = vpack.c.b16 %v532, %v528
    %v901 = vpack.c.b16 %v533, %v529
    %v902 = vpack.c.b16 %v534, %v530
    %v903 = vpack.c.b16 %v539, %v535
    %v904 = vpack.c.b16 %v540, %v536
    %v905 = vpack.c.b16 %v541, %v537
    %v906 = vpack.c.b16 %v542, %v538
    %v907 = vpack.c.b16 %v547, %v543
    %v908 = vpack.c.b16 %v548, %v544
    %v909 = vpack.c.b16 %v549, %v545
    %v910 = vpack.c.b16 %v550, %v546
    %v911 = vpack.c.b16 %v555, %v551
    %v912 = vpack.c.b16 %v556, %v552
    %v913 = vpack.c.b16 %v557, %v553
    %v914 = vpack.c.b16 %v558, %v554
    %v915 = vpack.c.b16 %v563, %v559
    %v916 = vpack.c.b16 %v564, %v560
    %v917 = vpack.c.b16 %v565, %v561
    %v918 = vpack.c.b16 %v566, %v562
    %v919 = vpack.c.b16 %v571, %v567
    %v920 = vpack.c.b16 %v572, %v568
    %v921 = vpack.c.b16 %v573, %v569
    %v922 = vpack.c.b16 %v574, %v570
    %v923 = vpack.c.b16 %v579, %v575
    %v924 = vpack.c.b16 %v580, %v576
    %v925 = vpack.c.b16 %v581, %v577
    %v926 = vpack.c.b16 %v582, %v578
    %v927 = vpack.c.b16 %v587, %v583
    %v928 = vpack.c.b16 %v588, %v584
    %v929 = vpack.c.b16 %v589, %v585
    %v930 = vpack.c.b16 %v590, %v586
    %v931 = vpack.c.b16 %v595, %v591
    %v932 = vpack.c.b16 %v596, %v592
    %v933 = vpack.c.b16 %v597, %v593
    %v934 = vpack.c.b16 %v598, %v594
    %v935 = vpack.c.b16 %v603, %v599
    %v936 = vpack.c.b16 %v604, %v600
    %v937 = vpack.c.b16 %v605, %v601
    %v938 = vpack.c.b16 %v606, %v602
    %v939 = vpack.c.b16 %v611, %v607
    %v940 = vpack.c.b16 %v612, %v608
    %v941 = vpack.c.b16 %v613, %v609
    %v942 = vpack.c.b16 %v614, %v610
    %v943 = vpack.c.b16 %v619, %v615
    %v944 = vpack.c.b16 %v620, %v616
    %v945 = vpack.c.b16 %v621, %v617
    %v946 = vpack.c.b16 %v622, %v618
    %v947 = vpack.c.b16 %v627, %v623
    %v948 = vpack.c.b16 %v628, %v624
    %v949 = vpack.c.b16 %v629, %v625
    %v950 = vpack.c.b16 %v630, %v626
    %v951 = vpack.c.b16 %v635, %v631
    %v952 = vpack.c.b16 %v636, %v632
    %v953 = vpack.c.b16 %v637, %v633
    %v954 = vpack.c.b16 %v638, %v634
    %v955 = vpack.c.b16 %v643, %v639
    %v956 = vpack.c.b16 %v644, %v640
    %v957 = vpack.c.b16 %v645, %v641
    %v958 = vpack.c.b16 %v646, %v642
    %v959 = vpack.c.b16 %v651, %v647
    %v960 = vpack.c.b16 %v652, %v648
    %v961 = vpack.c.b16 %v653, %v649
    %v962 = vpack.c.b16 %v654, %v650
    %v963 = vpack.c.b16 %v659, %v655
    %v964 = vpack.c.b16 %v660, %v656
    %v965 = vpack.c.b16 %v661, %v657
    %v966 = vpack.c.b16 %v662, %v658
    %v967 = vpack.c.b16 %v667, %v663
    %v968 = vpack.c.b16 %v668, %v664
    %v969 = vpack.c.b16 %v669, %v665
    %v970 = vpack.c.b16 %v670, %v666
    %v971 = vpack.c.b16 %v675, %v671
    %v972 = vpack.c.b16 %v676, %v672
    %v973 = vpack.c.b16 %v677, %v673
    %v974 = vpack.c.b16 %v678, %v674
    %v975 = vpack.c.b16 %v683, %v679
    %v976 = vpack.c.b16 %v684, %v680
    %v977 = vpack.c.b16 %v685, %v681
    %v978 = vpack.c.b16 %v686, %v682
    %v979 = vpack.c.b16 %v691, %v687
    %v980 = vpack.c.b16 %v692, %v688
    %v981 = vpack.c.b16 %v693, %v689
    %v982 = vpack.c.b16 %v694, %v690
    %v983 = vpack.c.b16 %v699, %v695
    %v984 = vpack.c.b16 %v700, %v696
    %v985 = vpack.c.b16 %v701, %v697
    %v986 = vpack.c.b16 %v702, %v698
    %v987 = vpack.c.b16 %v707, %v703
    %v988 = vpack.c.b16 %v708, %v704
    %v989 = vpack.c.b16 %v709, %v705
    %v990 = vpack.c.b16 %v710, %v706
    %v991 = vpack.c.b16 %v715, %v711
    %v992 = vpack.c.b16 %v716, %v712
    %v993 = vpack.c.b16 %v717, %v713
    %v994 = vpack.c.b16 %v718, %v714
    %v995 = vpack.c.b16 %v723, %v719
    %v996 = vpack.c.b16 %v724, %v720
    %v997 = vpack.c.b16 %v725, %v721
    %v998 = vpack.c.b16 %v726, %v722
    %v999 = vpack.c.b16 %v731, %v727
    %v1000 = vpack.c.b16 %v732, %v728
    %v1001 = vpack.c.b16 %v733, %v729
    %v1002 = vpack.c.b16 %v734, %v730
    %v1003 = vpack.c.b16 %v739, %v735
    %v1004 = vpack.c.b16 %v740, %v736
    %v1005 = vpack.c.b16 %v741, %v737
    %v1006 = vpack.c.b16 %v742, %v738
    %v1007 = vpack.c.b16 %v747, %v743
    %v1008 = vpack.c.b16 %v748, %v744
    %v1009 = vpack.c.b16 %v749, %v745
    %v1010 = vpack.c.b16 %v750, %v746
    %v1011 = vpack.c.b16 %v755, %v751
    %v1012 = vpack.c.b16 %v756, %v752
    %v1013 = vpack.c.b16 %v757, %v753
    %v1014 = vpack.c.b16 %v758, %v754
    %v1015 = vpack.c.b16 %v763, %v759
    %v1016 = vpack.c.b16 %v764, %v760
    %v1017 = vpack.c.b16 %v765, %v761
    %v1018 = vpack.c.b16 %v766, %v762
    %v1019 = vpack.c.b16 %v771, %v767
    %v1020 = vpack.c.b16 %v772, %v768
    %v1021 = vpack.c.b16 %v773, %v769
    %v1022 = vpack.c.b16 %v774, %v770
    %v1023 = vpack.c.b16 %v779, %v775
    %v1024 = vpack.c.b16 %v780, %v776
    %v1025 = vpack.c.b16 %v781, %v777
    %v1026 = vpack.c.b16 %v782, %v778
    %v1027 = vpack.c.b16 %v787, %v783
    %v1028 = vpack.c.b16 %v788, %v784
    %v1029 = vpack.c.b16 %v789, %v785
    %v1030 = vpack.c.b16 %v790, %v786
    %v1031 = vpack.c.b16 %v795, %v791
    %v1032 = vpack.c.b16 %v796, %v792
    %v1033 = vpack.c.b16 %v797, %v793
    %v1034 = vpack.c.b16 %v798, %v794
    %v1035 = vpack.c.b16 %v803, %v799
    %v1036 = vpack.c.b16 %v804, %v800
    %v1037 = vpack.c.b16 %v805, %v801
    %v1038 = vpack.c.b16 %v806, %v802
    %v1039 = vpack.c.b16 %v811, %v807
    %v1040 = vpack.c.b16 %v812, %v808
    %v1041 = vpack.c.b16 %v813, %v809
    %v1042 = vpack.c.b16 %v814, %v810
    %v1043 = vpack.c.b16 %v819, %v815
    %v1044 = vpack.c.b16 %v820, %v816
    %v1045 = vpack.c.b16 %v821, %v817
    %v1046 = vpack.c.b16 %v822, %v818
    %v1047 = vpack.c.b16 %v827, %v823
    %v1048 = vpack.c.b16 %v828, %v824
    %v1049 = vpack.c.b16 %v829, %v825
    %v1050 = vpack.c.b16 %v830, %v826
    %v1051 = vpack.c.b16 %v835, %v831
    %v1052 = vpack.c.b16 %v836, %v832
    %v1053 = vpack.c.b16 %v837, %v833
    %v1054 = vpack.c.b16 %v838, %v834
    %v1055 = vpack.c.b16 %v843, %v839
    %v1056 = vpack.c.b16 %v844, %v840
    %v1057 = vpack.c.b16 %v845, %v841
    %v1058 = vpack.c.b16 %v846, %v842
    %v1059 = vpack.c.b16 %v851, %v847
    %v1060 = vpack.c.b16 %v852, %v848
    %v1061 = vpack.c.b16 %v853, %v849
    %v1062 = vpack.c.b16 %v854, %v850
    %v1063 = vpack.c.b16 %v859, %v855
    %v1064 = vpack.c.b16 %v860, %v856
    %v1065 = vpack.c.b16 %v861, %v857
    %v1066 = vpack.c.b16 %v862, %v858
    %v1067 = vpack.c.b16 %v867, %v863
    %v1068 = vpack.c.b16 %v868, %v864
    %v1069 = vpack.c.b16 %v869, %v865
    %v1070 = vpack.c.b16 %v870, %v866
    %v1071 = vpack.c.b16 %v875, %v871
    %v1072 = vpack.c.b16 %v876, %v872
    %v1073 = vpack.c.b16 %v877, %v873
    %v1074 = vpack.c.b16 %v878, %v874
    %vm1271 = vcmask 130048
    %v1273 = vsel %vm1271, %v72, 0
    %1275 = vmatprep.subr.bf16.mxu0 %v880
    %1276 = vmatpush1.bf16.msra.mxu0 %v879
    %1277 = vmatprep.subr.bf16.mxu0 %v884
    %1278 = vmatpush1.bf16.msra.mxu0 %v883
    %1279 = vmatprep.subr.bf16.mxu0 %v888
    %1280 = vmatpush1.bf16.msra.mxu0 %v887
    %1281 = vmatprep.subr.bf16.mxu0 %v892
    %1282 = vmatpush1.bf16.msra.mxu0 %v891
    %1283 = vmatprep.subr.bf16.mxu0 %v896
    %1284 = vmatpush1.bf16.msra.mxu0 %v895
    %1285 = vmatprep.subr.bf16.mxu0 %v900
    %1286 = vmatpush1.bf16.msra.mxu0 %v899
    %1287 = vmatprep.subr.bf16.mxu0 %v904
    %1288 = vmatpush1.bf16.msra.mxu0 %v903
    %1289 = vmatprep.subr.bf16.mxu0 %v908
    %1290 = vmatpush1.bf16.msra.mxu0 %v907
    %1291 = vmatprep.subr.bf16.mxu0 %v912
    %1292 = vmatpush1.bf16.msra.mxu0 %v911
    %1293 = vmatprep.subr.bf16.mxu0 %v916
    %1294 = vmatpush1.bf16.msra.mxu0 %v915
    %1295 = vmatprep.subr.bf16.mxu0 %v920
    %1296 = vmatpush1.bf16.msra.mxu0 %v919
    %1297 = vmatprep.subr.bf16.mxu0 %v924
    %1298 = vmatpush1.bf16.msra.mxu0 %v923
    %1299 = vmatprep.subr.bf16.mxu0 %v928
    %1300 = vmatpush1.bf16.msra.mxu0 %v927
    %1301 = vmatprep.subr.bf16.mxu0 %v932
    %1302 = vmatpush1.bf16.msra.mxu0 %v931
    %1303 = vmatprep.subr.bf16.mxu0 %v936
    %1304 = vmatpush1.bf16.msra.mxu0 %v935
    %1305 = vmatprep.subr.bf16.mxu0 %v940
    %1306 = vmatpush1.bf16.msra.mxu0 %v939
    %1307 = vmatprep.mubr.bf16.mxu0 %v67
    %1308 = vmatmul.mubr.bf16.gmra.mrb[0].mxu0 %v66
    %v1309 = vpop.f32.mrb[0].mxu0
    %v1310 = vadd.f32 %v274, %v1309
    %v1311 = vpop.f32.mrb[0].mxu0
    %v1312 = vadd.f32 %v278, %v1311
    %v1313 = vpop.f32.mrb[0].mxu0
    %v1314 = vpop.f32.mrb[0].mxu0
    %1315 = vdwg.mxu0
    %1316 = vmatprep.subr.bf16.mxu0 %v944
    %1317 = vmatpush1.bf16.msra.mxu0 %v943
    %1318 = vmatprep.subr.bf16.mxu0 %v948
    %1319 = vmatpush1.bf16.msra.mxu0 %v947
    %1320 = vmatprep.subr.bf16.mxu0 %v952
    %1321 = vmatpush1.bf16.msra.mxu0 %v951
    %1322 = vmatprep.subr.bf16.mxu0 %v956
    %1323 = vmatpush1.bf16.msra.mxu0 %v955
    %1324 = vmatprep.subr.bf16.mxu0 %v960
    %1325 = vmatpush1.bf16.msra.mxu0 %v959
    %1326 = vmatprep.subr.bf16.mxu0 %v964
    %1327 = vmatpush1.bf16.msra.mxu0 %v963
    %1328 = vmatprep.subr.bf16.mxu0 %v968
    %1329 = vmatpush1.bf16.msra.mxu0 %v967
    %1330 = vmatprep.subr.bf16.mxu0 %v972
    %1331 = vmatpush1.bf16.msra.mxu0 %v971
    %1332 = vmatprep.subr.bf16.mxu0 %v976
    %1333 = vmatpush1.bf16.msra.mxu0 %v975
    %1334 = vmatprep.subr.bf16.mxu0 %v980
    %1335 = vmatpush1.bf16.msra.mxu0 %v979
    %1336 = vmatprep.subr.bf16.mxu0 %v984
    %1337 = vmatpush1.bf16.msra.mxu0 %v983
    %1338 = vmatprep.subr.bf16.mxu0 %v988
    %1339 = vmatpush1.bf16.msra.mxu0 %v987
    %1340 = vmatprep.subr.bf16.mxu0 %v992
    %1341 = vmatpush1.bf16.msra.mxu0 %v991
    %1342 = vmatprep.subr.bf16.mxu0 %v996
    %1343 = vmatpush1.bf16.msra.mxu0 %v995
    %1344 = vmatprep.subr.bf16.mxu0 %v1000
    %1345 = vmatpush1.bf16.msra.mxu0 %v999
    %1346 = vmatprep.subr.bf16.mxu0 %v1004
    %1347 = vmatpush1.bf16.msra.mxu0 %v1003
    %1348 = vmatprep.mubr.bf16.mxu0 %v69
    %1349 = vmatmul.mubr.bf16.gmra.mrb[0].mxu0 %v68
    %v1350 = vpop.f32.mrb[0].mxu0
    %v1351 = vadd.f32 %v1310, %v1350
    %v1352 = vpop.f32.mrb[0].mxu0
    %v1353 = vadd.f32 %v1312, %v1352
    %v1354 = vpop.f32.mrb[0].mxu0
    %v1355 = vpop.f32.mrb[0].mxu0
    %1356 = vdwg.mxu0
    %1357 = vmatprep.subr.bf16.mxu0 %v1008
    %1358 = vmatpush1.bf16.msra.mxu0 %v1007
    %1359 = vmatprep.subr.bf16.mxu0 %v1012
    %1360 = vmatpush1.bf16.msra.mxu0 %v1011
    %1361 = vmatprep.subr.bf16.mxu0 %v1016
    %1362 = vmatpush1.bf16.msra.mxu0 %v1015
    %1363 = vmatprep.subr.bf16.mxu0 %v1020
    %1364 = vmatpush1.bf16.msra.mxu0 %v1019
    %1365 = vmatprep.subr.bf16.mxu0 %v1024
    %1366 = vmatpush1.bf16.msra.mxu0 %v1023
    %1367 = vmatprep.subr.bf16.mxu0 %v1028
    %1368 = vmatpush1.bf16.msra.mxu0 %v1027
    %1369 = vmatprep.subr.bf16.mxu0 %v1032
    %1370 = vmatpush1.bf16.msra.mxu0 %v1031
    %1371 = vmatprep.subr.bf16.mxu0 %v1036
    %1372 = vmatpush1.bf16.msra.mxu0 %v1035
    %1373 = vmatprep.subr.bf16.mxu0 %v1040
    %1374 = vmatpush1.bf16.msra.mxu0 %v1039
    %1375 = vmatprep.subr.bf16.mxu0 %v1044
    %1376 = vmatpush1.bf16.msra.mxu0 %v1043
    %1377 = vmatprep.subr.bf16.mxu0 %v1048
    %1378 = vmatpush1.bf16.msra.mxu0 %v1047
    %1379 = vmatprep.subr.bf16.mxu0 %v1052
    %1380 = vmatpush1.bf16.msra.mxu0 %v1051
    %1381 = vmatprep.subr.bf16.mxu0 %v1056
    %1382 = vmatpush1.bf16.msra.mxu0 %v1055
    %1383 = vmatprep.subr.bf16.mxu0 %v1060
    %1384 = vmatpush1.bf16.msra.mxu0 %v1059
    %1385 = vmatprep.subr.bf16.mxu0 %v1064
    %1386 = vmatpush1.bf16.msra.mxu0 %v1063
    %1387 = vmatprep.subr.bf16.mxu0 %v1068
    %1388 = vmatpush1.bf16.msra.mxu0 %v1067
    %1389 = vmatprep.mubr.bf16.mxu0 %v71
    %1390 = vmatmul.mubr.bf16.gmra.mrb[0].mxu0 %v70
    %v1391 = vpop.f32.mrb[0].mxu0
    %v1392 = vadd.f32 %v1351, %v1391
    %v1393 = vpop.f32.mrb[0].mxu0
    %v1394 = vadd.f32 %v1353, %v1393
    %v1395 = vpop.f32.mrb[0].mxu0
    %v1396 = vpop.f32.mrb[0].mxu0
    %1397 = vdwg.mxu0
    %1398 = vmatprep.subr.bf16.mxu0 %v1072
    %1399 = vmatpush1.bf16.msra.mxu0 %v1071
    %1400 = vmatprep.subr.bf16.mxu0 0
    %1401 = vmatpush1.bf16.msra.mxu0 0
    %1402 = vmatprep.subr.bf16.mxu0 0
    %1403 = vmatpush1.bf16.msra.mxu0 0
    %1404 = vmatprep.subr.bf16.mxu0 0
    %1405 = vmatpush1.bf16.msra.mxu0 0
    %1406 = vmatprep.subr.bf16.mxu0 0
    %1407 = vmatpush1.bf16.msra.mxu0 0
    %1408 = vmatprep.subr.bf16.mxu0 0
    %1409 = vmatpush1.bf16.msra.mxu0 0
    %1410 = vmatprep.subr.bf16.mxu0 0
    %1411 = vmatpush1.bf16.msra.mxu0 0
    %1412 = vmatprep.subr.bf16.mxu0 0
    %1413 = vmatpush1.bf16.msra.mxu0 0
    %1414 = vmatprep.subr.bf16.mxu0 0
    %1415 = vmatpush1.bf16.msra.mxu0 0
    %1416 = vmatprep.subr.bf16.mxu0 0
    %1417 = vmatpush1.bf16.msra.mxu0 0
    %1418 = vmatprep.subr.bf16.mxu0 0
    %1419 = vmatpush1.bf16.msra.mxu0 0
    %1420 = vmatprep.subr.bf16.mxu0 0
    %1421 = vmatpush1.bf16.msra.mxu0 0
    %1422 = vmatprep.subr.bf16.mxu0 0
    %1423 = vmatpush1.bf16.msra.mxu0 0
    %1424 = vmatprep.subr.bf16.mxu0 0
    %1425 = vmatpush1.bf16.msra.mxu0 0
    %1426 = vmatprep.subr.bf16.mxu0 0
    %1427 = vmatpush1.bf16.msra.mxu0 0
    %1428 = vmatprep.subr.bf16.mxu0 0
    %1429 = vmatpush1.bf16.msra.mxu0 0
    %1430 = vmatprep.mubr.bf16.mxu0 0
    %1431 = vmatmul.mubr.bf16.gmra.mrb[0].mxu0 %v1273
    %v1432 = vpop.f32.mrb[0].mxu0
    %v1433 = vadd.f32 %v1392, %v1432
    %v1434 = vpop.f32.mrb[0].mxu0
    %v1435 = vadd.f32 %v1394, %v1434
    %v1436 = vpop.f32.mrb[0].mxu0
    %v1437 = vpop.f32.mrb[0].mxu0
    %1438 = vdwg.mxu0
    %1439 = vmatprep.subr.bf16.mxu0 %v882
    %1440 = vmatpush1.bf16.msra.mxu0 %v881
    %1441 = vmatprep.subr.bf16.mxu0 %v886
    %1442 = vmatpush1.bf16.msra.mxu0 %v885
    %1443 = vmatprep.subr.bf16.mxu0 %v890
    %1444 = vmatpush1.bf16.msra.mxu0 %v889
    %1445 = vmatprep.subr.bf16.mxu0 %v894
    %1446 = vmatpush1.bf16.msra.mxu0 %v893
    %1447 = vmatprep.subr.bf16.mxu0 %v898
    %1448 = vmatpush1.bf16.msra.mxu0 %v897
    %1449 = vmatprep.subr.bf16.mxu0 %v902
    %1450 = vmatpush1.bf16.msra.mxu0 %v901
    %1451 = vmatprep.subr.bf16.mxu0 %v906
    %1452 = vmatpush1.bf16.msra.mxu0 %v905
    %1453 = vmatprep.subr.bf16.mxu0 %v910
    %1454 = vmatpush1.bf16.msra.mxu0 %v909
    %1455 = vmatprep.subr.bf16.mxu0 %v914
    %1456 = vmatpush1.bf16.msra.mxu0 %v913
    %1457 = vmatprep.subr.bf16.mxu0 %v918
    %1458 = vmatpush1.bf16.msra.mxu0 %v917
    %1459 = vmatprep.subr.bf16.mxu0 %v922
    %1460 = vmatpush1.bf16.msra.mxu0 %v921
    %1461 = vmatprep.subr.bf16.mxu0 %v926
    %1462 = vmatpush1.bf16.msra.mxu0 %v925
    %1463 = vmatprep.subr.bf16.mxu0 %v930
    %1464 = vmatpush1.bf16.msra.mxu0 %v929
    %1465 = vmatprep.subr.bf16.mxu0 %v934
    %1466 = vmatpush1.bf16.msra.mxu0 %v933
    %1467 = vmatprep.subr.bf16.mxu0 %v938
    %1468 = vmatpush1.bf16.msra.mxu0 %v937
    %1469 = vmatprep.subr.bf16.mxu0 %v942
    %1470 = vmatpush1.bf16.msra.mxu0 %v941
    %1471 = vmatprep.mubr.bf16.mxu0 %v67
    %1472 = vmatmul.mubr.bf16.gmra.mrb[0].mxu0 %v66
    %v1473 = vpop.f32.mrb[0].mxu0
    %v1474 = vadd.f32 %v282, %v1473
    %v1475 = vpop.f32.mrb[0].mxu0
    %v1476 = vadd.f32 %v286, %v1475
    %v1477 = vpop.f32.mrb[0].mxu0
    %v1478 = vpop.f32.mrb[0].mxu0
    %1479 = vdwg.mxu0
    %1480 = vmatprep.subr.bf16.mxu0 %v946
    %1481 = vmatpush1.bf16.msra.mxu0 %v945
    %1482 = vmatprep.subr.bf16.mxu0 %v950
    %1483 = vmatpush1.bf16.msra.mxu0 %v949
    %1484 = vmatprep.subr.bf16.mxu0 %v954
    %1485 = vmatpush1.bf16.msra.mxu0 %v953
    %1486 = vmatprep.subr.bf16.mxu0 %v958
    %1487 = vmatpush1.bf16.msra.mxu0 %v957
    %1488 = vmatprep.subr.bf16.mxu0 %v962
    %1489 = vmatpush1.bf16.msra.mxu0 %v961
    %1490 = vmatprep.subr.bf16.mxu0 %v966
    %1491 = vmatpush1.bf16.msra.mxu0 %v965
    %1492 = vmatprep.subr.bf16.mxu0 %v970
    %1493 = vmatpush1.bf16.msra.mxu0 %v969
    %1494 = vmatprep.subr.bf16.mxu0 %v974
    %1495 = vmatpush1.bf16.msra.mxu0 %v973
    %1496 = vmatprep.subr.bf16.mxu0 %v978
    %1497 = vmatpush1.bf16.msra.mxu0 %v977
    %1498 = vmatprep.subr.bf16.mxu0 %v982
    %1499 = vmatpush1.bf16.msra.mxu0 %v981
    %1500 = vmatprep.subr.bf16.mxu0 %v986
    %1501 = vmatpush1.bf16.msra.mxu0 %v985
    %1502 = vmatprep.subr.bf16.mxu0 %v990
    %1503 = vmatpush1.bf16.msra.mxu0 %v989
    %1504 = vmatprep.subr.bf16.mxu0 %v994
    %1505 = vmatpush1.bf16.msra.mxu0 %v993
    %1506 = vmatprep.subr.bf16.mxu0 %v998
    %1507 = vmatpush1.bf16.msra.mxu0 %v997
    %1508 = vmatprep.subr.bf16.mxu0 %v1002
    %1509 = vmatpush1.bf16.msra.mxu0 %v1001
    %1510 = vmatprep.subr.bf16.mxu0 %v1006
    %1511 = vmatpush1.bf16.msra.mxu0 %v1005
    %1512 = vmatprep.mubr.bf16.mxu0 %v69
    %1513 = vmatmul.mubr.bf16.gmra.mrb[0].mxu0 %v68
    %v1514 = vpop.f32.mrb[0].mxu0
    %v1515 = vadd.f32 %v1474, %v1514
    %v1516 = vpop.f32.mrb[0].mxu0
    %v1517 = vadd.f32 %v1476, %v1516
    %v1518 = vpop.f32.mrb[0].mxu0
    %v1519 = vpop.f32.mrb[0].mxu0
    %1520 = vdwg.mxu0
    %1521 = vmatprep.subr.bf16.mxu0 %v1010
    %1522 = vmatpush1.bf16.msra.mxu0 %v1009
    %1523 = vmatprep.subr.bf16.mxu0 %v1014
    %1524 = vmatpush1.bf16.msra.mxu0 %v1013
    %1525 = vmatprep.subr.bf16.mxu0 %v1018
    %1526 = vmatpush1.bf16.msra.mxu0 %v1017
    %1527 = vmatprep.subr.bf16.mxu0 %v1022
    %1528 = vmatpush1.bf16.msra.mxu0 %v1021
    %1529 = vmatprep.subr.bf16.mxu0 %v1026
    %1530 = vmatpush1.bf16.msra.mxu0 %v1025
    %1531 = vmatprep.subr.bf16.mxu0 %v1030
    %1532 = vmatpush1.bf16.msra.mxu0 %v1029
    %1533 = vmatprep.subr.bf16.mxu0 %v1034
    %1534 = vmatpush1.bf16.msra.mxu0 %v1033
    %1535 = vmatprep.subr.bf16.mxu0 %v1038
    %1536 = vmatpush1.bf16.msra.mxu0 %v1037
    %1537 = vmatprep.subr.bf16.mxu0 %v1042
    %1538 = vmatpush1.bf16.msra.mxu0 %v1041
    %1539 = vmatprep.subr.bf16.mxu0 %v1046
    %1540 = vmatpush1.bf16.msra.mxu0 %v1045
    %1541 = vmatprep.subr.bf16.mxu0 %v1050
    %1542 = vmatpush1.bf16.msra.mxu0 %v1049
    %1543 = vmatprep.subr.bf16.mxu0 %v1054
    %1544 = vmatpush1.bf16.msra.mxu0 %v1053
    %1545 = vmatprep.subr.bf16.mxu0 %v1058
    %1546 = vmatpush1.bf16.msra.mxu0 %v1057
    %1547 = vmatprep.subr.bf16.mxu0 %v1062
    %1548 = vmatpush1.bf16.msra.mxu0 %v1061
    %1549 = vmatprep.subr.bf16.mxu0 %v1066
    %1550 = vmatpush1.bf16.msra.mxu0 %v1065
    %1551 = vmatprep.subr.bf16.mxu0 %v1070
    %1552 = vmatpush1.bf16.msra.mxu0 %v1069
    %1553 = vmatprep.mubr.bf16.mxu0 %v71
    %1554 = vmatmul.mubr.bf16.gmra.mrb[0].mxu0 %v70
    %v1555 = vpop.f32.mrb[0].mxu0
    %v1556 = vadd.f32 %v1515, %v1555
    %v1557 = vpop.f32.mrb[0].mxu0
    %v1558 = vadd.f32 %v1517, %v1557
    %v1559 = vpop.f32.mrb[0].mxu0
    %v1560 = vpop.f32.mrb[0].mxu0
    %1561 = vdwg.mxu0
    %1562 = vmatprep.subr.bf16.mxu0 %v1074
    %1563 = vmatpush1.bf16.msra.mxu0 %v1073
    %1564 = vmatprep.subr.bf16.mxu0 0
    %1565 = vmatpush1.bf16.msra.mxu0 0
    %1566 = vmatprep.subr.bf16.mxu0 0
    %1567 = vmatpush1.bf16.msra.mxu0 0
    %1568 = vmatprep.subr.bf16.mxu0 0
    %1569 = vmatpush1.bf16.msra.mxu0 0
    %1570 = vmatprep.subr.bf16.mxu0 0
    %1571 = vmatpush1.bf16.msra.mxu0 0
    %1572 = vmatprep.subr.bf16.mxu0 0
    %1573 = vmatpush1.bf16.msra.mxu0 0
    %1574 = vmatprep.subr.bf16.mxu0 0
    %1575 = vmatpush1.bf16.msra.mxu0 0
    %1576 = vmatprep.subr.bf16.mxu0 0
    %1577 = vmatpush1.bf16.msra.mxu0 0
    %1578 = vmatprep.subr.bf16.mxu0 0
    %1579 = vmatpush1.bf16.msra.mxu0 0
    %1580 = vmatprep.subr.bf16.mxu0 0
    %1581 = vmatpush1.bf16.msra.mxu0 0
    %1582 = vmatprep.subr.bf16.mxu0 0
    %1583 = vmatpush1.bf16.msra.mxu0 0
    %1584 = vmatprep.subr.bf16.mxu0 0
    %1585 = vmatpush1.bf16.msra.mxu0 0
    %1586 = vmatprep.subr.bf16.mxu0 0
    %1587 = vmatpush1.bf16.msra.mxu0 0
    %1588 = vmatprep.subr.bf16.mxu0 0
    %1589 = vmatpush1.bf16.msra.mxu0 0
    %1590 = vmatprep.subr.bf16.mxu0 0
    %1591 = vmatpush1.bf16.msra.mxu0 0
    %1592 = vmatprep.subr.bf16.mxu0 0
    %1593 = vmatpush1.bf16.msra.mxu0 0
    %1594 = vmatprep.mubr.bf16.mxu0 0
    %1595 = vmatmul.mubr.bf16.gmra.mrb[0].mxu0 %v1273
    %v1596 = vpop.f32.mrb[0].mxu0
    %v1597 = vadd.f32 %v1556, %v1596
    %v1598 = vpop.f32.mrb[0].mxu0
    %v1599 = vadd.f32 %v1558, %v1598
    %v1600 = vpop.f32.mrb[0].mxu0
    %v1601 = vpop.f32.mrb[0].mxu0
    %1602 = vdwg.mxu0
    %v1603 = vmax.f32 %v1433, 0.0
    %v1604 = vmax.f32 %v1435, 0.0
    %v1605 = vmax.f32 %v1597, 0.0
    %v1606 = vmax.f32 %v1599, 0.0
    %v1607 = vpack.c.bf16 %v1603, %v1603
    %v1608 = vpack.c.bf16 %v1604, %v1604
    %v1609 = vpack.c.bf16 %v1605, %v1605
    %v1610 = vpack.c.bf16 %v1606, %v1606
    %v1611 = vld [vmem:[%s3] sm:$0xff]
    %v1612 = vld [vmem:[%s3 + $0x8] sm:$0xff]
    %v1613 = vld [vmem:[%s3 + $0x10] sm:$0xff]
    %v1614 = vld [vmem:[%s3 + $0x18] sm:$0xff]
    %v1615 = vld [vmem:[%s3 + $0x20] sm:$0xff]
    %v1616 = vld [vmem:[%s3 + $0x28] sm:$0xff]
    %v1617 = vld [vmem:[%s3 + $0x30] sm:$0xff]
    %v1618 = vld [vmem:[%s3 + $0x38] sm:$0xff]
    %v1619 = vld [vmem:[%s3 + $0x40] sm:$0xff]
    %v1620 = vld [vmem:[%s3 + $0x48] sm:$0xff]
    %v1621 = vld [vmem:[%s3 + $0x50] sm:$0xff]
    %v1622 = vld [vmem:[%s3 + $0x58] sm:$0xff]
    %v1623 = vld [vmem:[%s3 + $0x60] sm:$0xff]
    %v1624 = vld [vmem:[%s3 + $0x68] sm:$0xff]
    %v1625 = vld [vmem:[%s3 + $0x70] sm:$0xff]
    %v1626 = vld [vmem:[%s3 + $0x78] sm:$0xff]
    %v1627 = vld [vmem:[%s3 + $0x80] sm:$0xff]
    %v1628 = vld [vmem:[%s3 + $0x88] sm:$0xff]
    %v1629 = vld [vmem:[%s3 + $0x90] sm:$0xff]
    %v1630 = vld [vmem:[%s3 + $0x98] sm:$0xff]
    %v1631 = vld [vmem:[%s3 + $0xa0] sm:$0xff]
    %v1632 = vld [vmem:[%s3 + $0xa8] sm:$0xff]
    %v1633 = vld [vmem:[%s3 + $0xb0] sm:$0xff]
    %v1634 = vld [vmem:[%s3 + $0xb8] sm:$0xff]
    %v1635 = vld [vmem:[%s3 + $0xc0] sm:$0xff]
    %v1636 = vld [vmem:[%s3 + $0xc8] sm:$0xff]
    %v1637 = vld [vmem:[%s3 + $0xd0] sm:$0xff]
    %v1638 = vld [vmem:[%s3 + $0xd8] sm:$0xff]
    %v1639 = vld [vmem:[%s3 + $0xe0] sm:$0xff]
    %v1640 = vld [vmem:[%s3 + $0xe8] sm:$0xff]
    %v1641 = vld [vmem:[%s3 + $0xf0] sm:$0xff]
    %v1642 = vld [vmem:[%s3 + $0xf8] sm:$0xff]
    %v1643 = vld [vmem:[%s3 + $0x100] sm:$0xff]
    %v1644 = vld [vmem:[%s3 + $0x108] sm:$0xff]
    %v1645 = vld [vmem:[%s3 + $0x110] sm:$0xff]
    %v1646 = vld [vmem:[%s3 + $0x118] sm:$0xff]
    %v1647 = vld [vmem:[%s3 + $0x120] sm:$0xff]
    %v1648 = vld [vmem:[%s3 + $0x128] sm:$0xff]
    %v1649 = vld [vmem:[%s3 + $0x130] sm:$0xff]
    %v1650 = vld [vmem:[%s3 + $0x138] sm:$0xff]
    %v1651 = vld [vmem:[%s3 + $0x140] sm:$0xff]
    %v1652 = vld [vmem:[%s3 + $0x148] sm:$0xff]
    %v1653 = vld [vmem:[%s3 + $0x150] sm:$0xff]
    %v1654 = vld [vmem:[%s3 + $0x158] sm:$0xff]
    %v1655 = vld [vmem:[%s3 + $0x160] sm:$0xff]
    %v1656 = vld [vmem:[%s3 + $0x168] sm:$0xff]
    %v1657 = vld [vmem:[%s3 + $0x170] sm:$0xff]
    %v1658 = vld [vmem:[%s3 + $0x178] sm:$0xff]
    %v1659 = vld [vmem:[%s3 + $0x180] sm:$0xff]
    %v1660 = vld [vmem:[%s3 + $0x188] sm:$0xff]
    %v1661 = vld [vmem:[%s3 + $0x190] sm:$0xff]
    %v1662 = vld [vmem:[%s3 + $0x198] sm:$0xff]
    %v1663 = vld [vmem:[%s3 + $0x1a0] sm:$0xff]
    %v1664 = vld [vmem:[%s3 + $0x1a8] sm:$0xff]
    %v1665 = vld [vmem:[%s3 + $0x1b0] sm:$0xff]
    %v1666 = vld [vmem:[%s3 + $0x1b8] sm:$0xff]
    %v1667 = vld [vmem:[%s3 + $0x1c0] sm:$0xff]
    %v1668 = vld [vmem:[%s3 + $0x1c8] sm:$0xff]
    %v1669 = vld [vmem:[%s3 + $0x1d0] sm:$0xff]
    %v1670 = vld [vmem:[%s3 + $0x1d8] sm:$0xff]
    %v1671 = vld [vmem:[%s3 + $0x1e0] sm:$0xff]
    %v1672 = vld [vmem:[%s3 + $0x1e8] sm:$0xff]
    %v1673 = vld [vmem:[%s3 + $0x1f0] sm:$0xff]
    %v1674 = vld [vmem:[%s3 + $0x1f8] sm:$0xff]
    %v1675 = vld [vmem:[%s3 + $0x200] sm:$0xff]
    %v1676 = vld [vmem:[%s3 + $0x208] sm:$0xff]
    %v1677 = vld [vmem:[%s3 + $0x210] sm:$0xff]
    %v1678 = vld [vmem:[%s3 + $0x218] sm:$0xff]
    %v1679 = vld [vmem:[%s3 + $0x220] sm:$0xff]
    %v1680 = vld [vmem:[%s3 + $0x228] sm:$0xff]
    %v1681 = vld [vmem:[%s3 + $0x230] sm:$0xff]
    %v1682 = vld [vmem:[%s3 + $0x238] sm:$0xff]
    %v1683 = vld [vmem:[%s3 + $0x240] sm:$0xff]
    %v1684 = vld [vmem:[%s3 + $0x248] sm:$0xff]
    %v1685 = vld [vmem:[%s3 + $0x250] sm:$0xff]
    %v1686 = vld [vmem:[%s3 + $0x258] sm:$0xff]
    %v1687 = vld [vmem:[%s3 + $0x260] sm:$0xff]
    %v1688 = vld [vmem:[%s3 + $0x268] sm:$0xff]
    %v1689 = vld [vmem:[%s3 + $0x270] sm:$0xff]
    %v1690 = vld [vmem:[%s3 + $0x278] sm:$0xff]
    %v1691 = vld [vmem:[%s3 + $0x280] sm:$0xff]
    %v1692 = vld [vmem:[%s3 + $0x288] sm:$0xff]
    %v1693 = vld [vmem:[%s3 + $0x290] sm:$0xff]
    %v1694 = vld [vmem:[%s3 + $0x298] sm:$0xff]
    %v1695 = vld [vmem:[%s3 + $0x2a0] sm:$0xff]
    %v1696 = vld [vmem:[%s3 + $0x2a8] sm:$0xff]
    %v1697 = vld [vmem:[%s3 + $0x2b0] sm:$0xff]
    %v1698 = vld [vmem:[%s3 + $0x2b8] sm:$0xff]
    %v1699 = vld [vmem:[%s3 + $0x2c0] sm:$0xff]
    %v1700 = vld [vmem:[%s3 + $0x2c8] sm:$0xff]
    %v1701 = vld [vmem:[%s3 + $0x2d0] sm:$0xff]
    %v1702 = vld [vmem:[%s3 + $0x2d8] sm:$0xff]
    %v1703 = vld [vmem:[%s3 + $0x2e0] sm:$0xff]
    %v1704 = vld [vmem:[%s3 + $0x2e8] sm:$0xff]
    %v1705 = vld [vmem:[%s3 + $0x2f0] sm:$0xff]
    %v1706 = vld [vmem:[%s3 + $0x2f8] sm:$0xff]
    %v1707 = vld [vmem:[%s3 + $0x300] sm:$0xff]
    %v1708 = vld [vmem:[%s3 + $0x308] sm:$0xff]
    %v1709 = vld [vmem:[%s3 + $0x310] sm:$0xff]
    %v1710 = vld [vmem:[%s3 + $0x318] sm:$0xff]
    %v1711 = vld [vmem:[%s3 + $0x320] sm:$0xff]
    %v1712 = vld [vmem:[%s3 + $0x328] sm:$0xff]
    %v1713 = vld [vmem:[%s3 + $0x330] sm:$0xff]
    %v1714 = vld [vmem:[%s3 + $0x338] sm:$0xff]
    %v1715 = vld [vmem:[%s3 + $0x340] sm:$0xff]
    %v1716 = vld [vmem:[%s3 + $0x348] sm:$0xff]
    %v1717 = vld [vmem:[%s3 + $0x350] sm:$0xff]
    %v1718 = vld [vmem:[%s3 + $0x358] sm:$0xff]
    %v1719 = vld [vmem:[%s3 + $0x360] sm:$0xff]
    %v1720 = vld [vmem:[%s3 + $0x368] sm:$0xff]
    %v1721 = vld [vmem:[%s3 + $0x370] sm:$0xff]
    %v1722 = vld [vmem:[%s3 + $0x378] sm:$0xff]
    %v1723 = vld [vmem:[%s3 + $0x380] sm:$0xff]
    %v1724 = vld [vmem:[%s3 + $0x388] sm:$0xff]
    %v1725 = vld [vmem:[%s3 + $0x390] sm:$0xff]
    %v1726 = vld [vmem:[%s3 + $0x398] sm:$0xff]
    %v1727 = vld [vmem:[%s3 + $0x3a0] sm:$0xff]
    %v1728 = vld [vmem:[%s3 + $0x3a8] sm:$0xff]
    %v1729 = vld [vmem:[%s3 + $0x3b0] sm:$0xff]
    %v1730 = vld [vmem:[%s3 + $0x3b8] sm:$0xff]
    %v1731 = vld [vmem:[%s3 + $0x3c0] sm:$0xff]
    %v1732 = vld [vmem:[%s3 + $0x3c8] sm:$0xff]
    %v1733 = vld [vmem:[%s3 + $0x3d0] sm:$0xff]
    %v1734 = vld [vmem:[%s3 + $0x3d8] sm:$0xff]
    %v1735 = vld [vmem:[%s3 + $0x3e0] sm:$0xff]
    %v1736 = vld [vmem:[%s3 + $0x3e8] sm:$0xff]
    %v1737 = vld [vmem:[%s3 + $0x3f0] sm:$0xff]
    %v1738 = vld [vmem:[%s3 + $0x3f8] sm:$0xff]
    %v1739 = vld [vmem:[%s3 + $0x400] sm:$0xff]
    %v1740 = vld [vmem:[%s3 + $0x408] sm:$0xff]
    %v1741 = vld [vmem:[%s3 + $0x410] sm:$0xff]
    %v1742 = vld [vmem:[%s3 + $0x418] sm:$0xff]
    %v1743 = vld [vmem:[%s3 + $0x420] sm:$0xff]
    %v1744 = vld [vmem:[%s3 + $0x428] sm:$0xff]
    %v1745 = vld [vmem:[%s3 + $0x430] sm:$0xff]
    %v1746 = vld [vmem:[%s3 + $0x438] sm:$0xff]
    %v1747 = vld [vmem:[%s3 + $0x440] sm:$0xff]
    %v1748 = vld [vmem:[%s3 + $0x448] sm:$0xff]
    %v1749 = vld [vmem:[%s3 + $0x450] sm:$0xff]
    %v1750 = vld [vmem:[%s3 + $0x458] sm:$0xff]
    %v1751 = vld [vmem:[%s3 + $0x460] sm:$0xff]
    %v1752 = vld [vmem:[%s3 + $0x468] sm:$0xff]
    %v1753 = vld [vmem:[%s3 + $0x470] sm:$0xff]
    %v1754 = vld [vmem:[%s3 + $0x478] sm:$0xff]
    %v1755 = vld [vmem:[%s3 + $0x480] sm:$0xff]
    %v1756 = vld [vmem:[%s3 + $0x488] sm:$0xff]
    %v1757 = vld [vmem:[%s3 + $0x490] sm:$0xff]
    %v1758 = vld [vmem:[%s3 + $0x498] sm:$0xff]
    %v1759 = vld [vmem:[%s3 + $0x4a0] sm:$0xff]
    %v1760 = vld [vmem:[%s3 + $0x4a8] sm:$0xff]
    %v1761 = vld [vmem:[%s3 + $0x4b0] sm:$0xff]
    %v1762 = vld [vmem:[%s3 + $0x4b8] sm:$0xff]
    %v1763 = vld [vmem:[%s3 + $0x4c0] sm:$0xff]
    %v1764 = vld [vmem:[%s3 + $0x4c8] sm:$0xff]
    %v1765 = vld [vmem:[%s3 + $0x4d0] sm:$0xff]
    %v1766 = vld [vmem:[%s3 + $0x4d8] sm:$0xff]
    %v1767 = vld [vmem:[%s3 + $0x4e0] sm:$0xff]
    %v1768 = vld [vmem:[%s3 + $0x4e8] sm:$0xff]
    %v1769 = vld [vmem:[%s3 + $0x4f0] sm:$0xff]
    %v1770 = vld [vmem:[%s3 + $0x4f8] sm:$0xff]
    %v1771 = vld [vmem:[%s3 + $0x500] sm:$0xff]
    %v1772 = vld [vmem:[%s3 + $0x508] sm:$0xff]
    %v1773 = vld [vmem:[%s3 + $0x510] sm:$0xff]
    %v1774 = vld [vmem:[%s3 + $0x518] sm:$0xff]
    %v1775 = vld [vmem:[%s3 + $0x520] sm:$0xff]
    %v1776 = vld [vmem:[%s3 + $0x528] sm:$0xff]
    %v1777 = vld [vmem:[%s3 + $0x530] sm:$0xff]
    %v1778 = vld [vmem:[%s3 + $0x538] sm:$0xff]
    %v1779 = vld [vmem:[%s3 + $0x540] sm:$0xff]
    %v1780 = vld [vmem:[%s3 + $0x548] sm:$0xff]
    %v1781 = vld [vmem:[%s3 + $0x550] sm:$0xff]
    %v1782 = vld [vmem:[%s3 + $0x558] sm:$0xff]
    %v1783 = vld [vmem:[%s3 + $0x560] sm:$0xff]
    %v1784 = vld [vmem:[%s3 + $0x568] sm:$0xff]
    %v1785 = vld [vmem:[%s3 + $0x570] sm:$0xff]
    %v1786 = vld [vmem:[%s3 + $0x578] sm:$0xff]
    %v1787 = vld [vmem:[%s3 + $0x580] sm:$0xff]
    %v1788 = vld [vmem:[%s3 + $0x588] sm:$0xff]
    %v1789 = vld [vmem:[%s3 + $0x590] sm:$0xff]
    %v1790 = vld [vmem:[%s3 + $0x598] sm:$0xff]
    %v1791 = vld [vmem:[%s3 + $0x5a0] sm:$0xff]
    %v1792 = vld [vmem:[%s3 + $0x5a8] sm:$0xff]
    %v1793 = vld [vmem:[%s3 + $0x5b0] sm:$0xff]
    %v1794 = vld [vmem:[%s3 + $0x5b8] sm:$0xff]
    %v1795 = vld [vmem:[%s3 + $0x5c0] sm:$0xff]
    %v1796 = vld [vmem:[%s3 + $0x5c8] sm:$0xff]
    %v1797 = vld [vmem:[%s3 + $0x5d0] sm:$0xff]
    %v1798 = vld [vmem:[%s3 + $0x5d8] sm:$0xff]
    %v1799 = vld [vmem:[%s3 + $0x5e0] sm:$0xff]
    %v1800 = vld [vmem:[%s3 + $0x5e8] sm:$0xff]
    %v1801 = vld [vmem:[%s3 + $0x5f0] sm:$0xff]
    %v1802 = vld [vmem:[%s3 + $0x5f8] sm:$0xff]
    %v1803 = vld [vmem:[%s3 + $0x600] sm:$0xff]
    %v1804 = vld [vmem:[%s3 + $0x608] sm:$0xff]
    %v1805 = vld [vmem:[%s3 + $0x610] sm:$0xff]
    %v1806 = vld [vmem:[%s3 + $0x618] sm:$0xff]
    %v1807 = vld [vmem:[%s3 + $0x620] sm:$0xff]
    %v1808 = vld [vmem:[%s3 + $0x628] sm:$0xff]
    %v1809 = vld [vmem:[%s3 + $0x630] sm:$0xff]
    %v1810 = vld [vmem:[%s3 + $0x638] sm:$0xff]
    %v1811 = vld [vmem:[%s3 + $0x640] sm:$0xff]
    %v1812 = vld [vmem:[%s3 + $0x648] sm:$0xff]
    %v1813 = vld [vmem:[%s3 + $0x650] sm:$0xff]
    %v1814 = vld [vmem:[%s3 + $0x658] sm:$0xff]
    %v1815 = vld [vmem:[%s3 + $0x660] sm:$0xff]
    %v1816 = vld [vmem:[%s3 + $0x668] sm:$0xff]
    %v1817 = vld [vmem:[%s3 + $0x670] sm:$0xff]
    %v1818 = vld [vmem:[%s3 + $0x678] sm:$0xff]
    %v1819 = vld [vmem:[%s3 + $0x680] sm:$0xff]
    %v1820 = vld [vmem:[%s3 + $0x688] sm:$0xff]
    %v1821 = vld [vmem:[%s3 + $0x690] sm:$0xff]
    %v1822 = vld [vmem:[%s3 + $0x698] sm:$0xff]
    %v1823 = vld [vmem:[%s3 + $0x6a0] sm:$0xff]
    %v1824 = vld [vmem:[%s3 + $0x6a8] sm:$0xff]
    %v1825 = vld [vmem:[%s3 + $0x6b0] sm:$0xff]
    %v1826 = vld [vmem:[%s3 + $0x6b8] sm:$0xff]
    %v1827 = vld [vmem:[%s3 + $0x6c0] sm:$0xff]
    %v1828 = vld [vmem:[%s3 + $0x6c8] sm:$0xff]
    %v1829 = vld [vmem:[%s3 + $0x6d0] sm:$0xff]
    %v1830 = vld [vmem:[%s3 + $0x6d8] sm:$0xff]
    %v1831 = vld [vmem:[%s3 + $0x6e0] sm:$0xff]
    %v1832 = vld [vmem:[%s3 + $0x6e8] sm:$0xff]
    %v1833 = vld [vmem:[%s3 + $0x6f0] sm:$0xff]
    %v1834 = vld [vmem:[%s3 + $0x6f8] sm:$0xff]
    %v1835 = vld [vmem:[%s3 + $0x700] sm:$0xff]
    %v1836 = vld [vmem:[%s3 + $0x708] sm:$0xff]
    %v1837 = vld [vmem:[%s3 + $0x710] sm:$0xff]
    %v1838 = vld [vmem:[%s3 + $0x718] sm:$0xff]
    %v1839 = vld [vmem:[%s3 + $0x720] sm:$0xff]
    %v1840 = vld [vmem:[%s3 + $0x728] sm:$0xff]
    %v1841 = vld [vmem:[%s3 + $0x730] sm:$0xff]
    %v1842 = vld [vmem:[%s3 + $0x738] sm:$0xff]
    %v1843 = vld [vmem:[%s3 + $0x740] sm:$0xff]
    %v1844 = vld [vmem:[%s3 + $0x748] sm:$0xff]
    %v1845 = vld [vmem:[%s3 + $0x750] sm:$0xff]
    %v1846 = vld [vmem:[%s3 + $0x758] sm:$0xff]
    %v1847 = vld [vmem:[%s3 + $0x760] sm:$0xff]
    %v1848 = vld [vmem:[%s3 + $0x768] sm:$0xff]
    %v1849 = vld [vmem:[%s3 + $0x770] sm:$0xff]
    %v1850 = vld [vmem:[%s3 + $0x778] sm:$0xff]
    %v1851 = vld [vmem:[%s3 + $0x780] sm:$0xff]
    %v1852 = vld [vmem:[%s3 + $0x788] sm:$0xff]
    %v1853 = vld [vmem:[%s3 + $0x790] sm:$0xff]
    %v1854 = vld [vmem:[%s3 + $0x798] sm:$0xff]
    %v1855 = vld [vmem:[%s3 + $0x7a0] sm:$0xff]
    %v1856 = vld [vmem:[%s3 + $0x7a8] sm:$0xff]
    %v1857 = vld [vmem:[%s3 + $0x7b0] sm:$0xff]
    %v1858 = vld [vmem:[%s3 + $0x7b8] sm:$0xff]
    %v1859 = vld [vmem:[%s3 + $0x7c0] sm:$0xff]
    %v1860 = vld [vmem:[%s3 + $0x7c8] sm:$0xff]
    %v1861 = vld [vmem:[%s3 + $0x7d0] sm:$0xff]
    %v1862 = vld [vmem:[%s3 + $0x7d8] sm:$0xff]
    %v1863 = vld [vmem:[%s3 + $0x7e0] sm:$0xff]
    %v1864 = vld [vmem:[%s3 + $0x7e8] sm:$0xff]
    %v1865 = vld [vmem:[%s3 + $0x7f0] sm:$0xff]
    %v1866 = vld [vmem:[%s3 + $0x7f8] sm:$0xff]
    %v1867 = vld [vmem:[%s4] sm:$0xff]
    %v1869 = vlaneseq
    %v1870 = vshrl.u32 %v1869, 7
    %v1871 = vsub.s32 0, %v1870
    %v1872 = vrot.slane %v1867, %v1871
    %v1873 = vlaneseq
    %v1874 = vshrl.u32 %v1873, 7
    %v1875 = vsub.s32 1, %v1874
    %v1876 = vrot.slane %v1867, %v1875
    %v1877 = vlaneseq
    %v1878 = vshrl.u32 %v1877, 7
    %v1879 = vsub.s32 2, %v1878
    %v1880 = vrot.slane %v1867, %v1879
    %v1881 = vlaneseq
    %v1882 = vshrl.u32 %v1881, 7
    %v1883 = vsub.s32 3, %v1882
    %v1884 = vrot.slane %v1867, %v1883
    %v1885 = vlaneseq
    %v1886 = vshrl.u32 %v1885, 7
    %v1887 = vsub.s32 4, %v1886
    %v1888 = vrot.slane %v1867, %v1887
    %v1889 = vlaneseq
    %v1890 = vshrl.u32 %v1889, 7
    %v1891 = vsub.s32 5, %v1890
    %v1892 = vrot.slane %v1867, %v1891
    %v1893 = vlaneseq
    %v1894 = vshrl.u32 %v1893, 7
    %v1895 = vsub.s32 6, %v1894
    %v1896 = vrot.slane %v1867, %v1895
    %v1897 = vlaneseq
    %v1898 = vshrl.u32 %v1897, 7
    %v1899 = vsub.s32 7, %v1898
    %v1900 = vrot.slane %v1867, %v1899
    %v2165 = vunpack.c.l.b16 %v1611
    %v2166 = vunpack.c.h.b16 %v1611
    %v2167 = vunpack.c.l.b16 %v1612
    %v2168 = vunpack.c.h.b16 %v1612
    %v2169 = vunpack.c.l.b16 %v1613
    %v2170 = vunpack.c.h.b16 %v1613
    %v2171 = vunpack.c.l.b16 %v1614
    %v2172 = vunpack.c.h.b16 %v1614
    %v2173 = vunpack.c.l.b16 %v1615
    %v2174 = vunpack.c.h.b16 %v1615
    %v2175 = vunpack.c.l.b16 %v1616
    %v2176 = vunpack.c.h.b16 %v1616
    %v2177 = vunpack.c.l.b16 %v1617
    %v2178 = vunpack.c.h.b16 %v1617
    %v2179 = vunpack.c.l.b16 %v1618
    %v2180 = vunpack.c.h.b16 %v1618
    %v2181 = vunpack.c.l.b16 %v1619
    %v2182 = vunpack.c.h.b16 %v1619
    %v2183 = vunpack.c.l.b16 %v1620
    %v2184 = vunpack.c.h.b16 %v1620
    %v2185 = vunpack.c.l.b16 %v1621
    %v2186 = vunpack.c.h.b16 %v1621
    %v2187 = vunpack.c.l.b16 %v1622
    %v2188 = vunpack.c.h.b16 %v1622
    %v2189 = vunpack.c.l.b16 %v1623
    %v2190 = vunpack.c.h.b16 %v1623
    %v2191 = vunpack.c.l.b16 %v1624
    %v2192 = vunpack.c.h.b16 %v1624
    %v2193 = vunpack.c.l.b16 %v1625
    %v2194 = vunpack.c.h.b16 %v1625
    %v2195 = vunpack.c.l.b16 %v1626
    %v2196 = vunpack.c.h.b16 %v1626
    %v2197 = vunpack.c.l.b16 %v1627
    %v2198 = vunpack.c.h.b16 %v1627
    %v2199 = vunpack.c.l.b16 %v1628
    %v2200 = vunpack.c.h.b16 %v1628
    %v2201 = vunpack.c.l.b16 %v1629
    %v2202 = vunpack.c.h.b16 %v1629
    %v2203 = vunpack.c.l.b16 %v1630
    %v2204 = vunpack.c.h.b16 %v1630
    %v2205 = vunpack.c.l.b16 %v1631
    %v2206 = vunpack.c.h.b16 %v1631
    %v2207 = vunpack.c.l.b16 %v1632
    %v2208 = vunpack.c.h.b16 %v1632
    %v2209 = vunpack.c.l.b16 %v1633
    %v2210 = vunpack.c.h.b16 %v1633
    %v2211 = vunpack.c.l.b16 %v1634
    %v2212 = vunpack.c.h.b16 %v1634
    %v2213 = vunpack.c.l.b16 %v1635
    %v2214 = vunpack.c.h.b16 %v1635
    %v2215 = vunpack.c.l.b16 %v1636
    %v2216 = vunpack.c.h.b16 %v1636
    %v2217 = vunpack.c.l.b16 %v1637
    %v2218 = vunpack.c.h.b16 %v1637
    %v2219 = vunpack.c.l.b16 %v1638
    %v2220 = vunpack.c.h.b16 %v1638
    %v2221 = vunpack.c.l.b16 %v1639
    %v2222 = vunpack.c.h.b16 %v1639
    %v2223 = vunpack.c.l.b16 %v1640
    %v2224 = vunpack.c.h.b16 %v1640
    %v2225 = vunpack.c.l.b16 %v1641
    %v2226 = vunpack.c.h.b16 %v1641
    %v2227 = vunpack.c.l.b16 %v1642
    %v2228 = vunpack.c.h.b16 %v1642
    %v2229 = vunpack.c.l.b16 %v1643
    %v2230 = vunpack.c.h.b16 %v1643
    %v2231 = vunpack.c.l.b16 %v1644
    %v2232 = vunpack.c.h.b16 %v1644
    %v2233 = vunpack.c.l.b16 %v1645
    %v2234 = vunpack.c.h.b16 %v1645
    %v2235 = vunpack.c.l.b16 %v1646
    %v2236 = vunpack.c.h.b16 %v1646
    %v2237 = vunpack.c.l.b16 %v1647
    %v2238 = vunpack.c.h.b16 %v1647
    %v2239 = vunpack.c.l.b16 %v1648
    %v2240 = vunpack.c.h.b16 %v1648
    %v2241 = vunpack.c.l.b16 %v1649
    %v2242 = vunpack.c.h.b16 %v1649
    %v2243 = vunpack.c.l.b16 %v1650
    %v2244 = vunpack.c.h.b16 %v1650
    %v2245 = vunpack.c.l.b16 %v1651
    %v2246 = vunpack.c.h.b16 %v1651
    %v2247 = vunpack.c.l.b16 %v1652
    %v2248 = vunpack.c.h.b16 %v1652
    %v2249 = vunpack.c.l.b16 %v1653
    %v2250 = vunpack.c.h.b16 %v1653
    %v2251 = vunpack.c.l.b16 %v1654
    %v2252 = vunpack.c.h.b16 %v1654
    %v2253 = vunpack.c.l.b16 %v1655
    %v2254 = vunpack.c.h.b16 %v1655
    %v2255 = vunpack.c.l.b16 %v1656
    %v2256 = vunpack.c.h.b16 %v1656
    %v2257 = vunpack.c.l.b16 %v1657
    %v2258 = vunpack.c.h.b16 %v1657
    %v2259 = vunpack.c.l.b16 %v1658
    %v2260 = vunpack.c.h.b16 %v1658
    %v2261 = vunpack.c.l.b16 %v1659
    %v2262 = vunpack.c.h.b16 %v1659
    %v2263 = vunpack.c.l.b16 %v1660
    %v2264 = vunpack.c.h.b16 %v1660
    %v2265 = vunpack.c.l.b16 %v1661
    %v2266 = vunpack.c.h.b16 %v1661
    %v2267 = vunpack.c.l.b16 %v1662
    %v2268 = vunpack.c.h.b16 %v1662
    %v2269 = vunpack.c.l.b16 %v1663
    %v2270 = vunpack.c.h.b16 %v1663
    %v2271 = vunpack.c.l.b16 %v1664
    %v2272 = vunpack.c.h.b16 %v1664
    %v2273 = vunpack.c.l.b16 %v1665
    %v2274 = vunpack.c.h.b16 %v1665
    %v2275 = vunpack.c.l.b16 %v1666
    %v2276 = vunpack.c.h.b16 %v1666
    %v2277 = vunpack.c.l.b16 %v1667
    %v2278 = vunpack.c.h.b16 %v1667
    %v2279 = vunpack.c.l.b16 %v1668
    %v2280 = vunpack.c.h.b16 %v1668
    %v2281 = vunpack.c.l.b16 %v1669
    %v2282 = vunpack.c.h.b16 %v1669
    %v2283 = vunpack.c.l.b16 %v1670
    %v2284 = vunpack.c.h.b16 %v1670
    %v2285 = vunpack.c.l.b16 %v1671
    %v2286 = vunpack.c.h.b16 %v1671
    %v2287 = vunpack.c.l.b16 %v1672
    %v2288 = vunpack.c.h.b16 %v1672
    %v2289 = vunpack.c.l.b16 %v1673
    %v2290 = vunpack.c.h.b16 %v1673
    %v2291 = vunpack.c.l.b16 %v1674
    %v2292 = vunpack.c.h.b16 %v1674
    %v2293 = vunpack.c.l.b16 %v1675
    %v2294 = vunpack.c.h.b16 %v1675
    %v2295 = vunpack.c.l.b16 %v1676
    %v2296 = vunpack.c.h.b16 %v1676
    %v2297 = vunpack.c.l.b16 %v1677
    %v2298 = vunpack.c.h.b16 %v1677
    %v2299 = vunpack.c.l.b16 %v1678
    %v2300 = vunpack.c.h.b16 %v1678
    %v2301 = vunpack.c.l.b16 %v1679
    %v2302 = vunpack.c.h.b16 %v1679
    %v2303 = vunpack.c.l.b16 %v1680
    %v2304 = vunpack.c.h.b16 %v1680
    %v2305 = vunpack.c.l.b16 %v1681
    %v2306 = vunpack.c.h.b16 %v1681
    %v2307 = vunpack.c.l.b16 %v1682
    %v2308 = vunpack.c.h.b16 %v1682
    %v2309 = vunpack.c.l.b16 %v1683
    %v2310 = vunpack.c.h.b16 %v1683
    %v2311 = vunpack.c.l.b16 %v1684
    %v2312 = vunpack.c.h.b16 %v1684
    %v2313 = vunpack.c.l.b16 %v1685
    %v2314 = vunpack.c.h.b16 %v1685
    %v2315 = vunpack.c.l.b16 %v1686
    %v2316 = vunpack.c.h.b16 %v1686
    %v2317 = vunpack.c.l.b16 %v1687
    %v2318 = vunpack.c.h.b16 %v1687
    %v2319 = vunpack.c.l.b16 %v1688
    %v2320 = vunpack.c.h.b16 %v1688
    %v2321 = vunpack.c.l.b16 %v1689
    %v2322 = vunpack.c.h.b16 %v1689
    %v2323 = vunpack.c.l.b16 %v1690
    %v2324 = vunpack.c.h.b16 %v1690
    %v2325 = vunpack.c.l.b16 %v1691
    %v2326 = vunpack.c.h.b16 %v1691
    %v2327 = vunpack.c.l.b16 %v1692
    %v2328 = vunpack.c.h.b16 %v1692
    %v2329 = vunpack.c.l.b16 %v1693
    %v2330 = vunpack.c.h.b16 %v1693
    %v2331 = vunpack.c.l.b16 %v1694
    %v2332 = vunpack.c.h.b16 %v1694
    %v2333 = vunpack.c.l.b16 %v1695
    %v2334 = vunpack.c.h.b16 %v1695
    %v2335 = vunpack.c.l.b16 %v1696
    %v2336 = vunpack.c.h.b16 %v1696
    %v2337 = vunpack.c.l.b16 %v1697
    %v2338 = vunpack.c.h.b16 %v1697
    %v2339 = vunpack.c.l.b16 %v1698
    %v2340 = vunpack.c.h.b16 %v1698
    %v2341 = vunpack.c.l.b16 %v1699
    %v2342 = vunpack.c.h.b16 %v1699
    %v2343 = vunpack.c.l.b16 %v1700
    %v2344 = vunpack.c.h.b16 %v1700
    %v2345 = vunpack.c.l.b16 %v1701
    %v2346 = vunpack.c.h.b16 %v1701
    %v2347 = vunpack.c.l.b16 %v1702
    %v2348 = vunpack.c.h.b16 %v1702
    %v2349 = vunpack.c.l.b16 %v1703
    %v2350 = vunpack.c.h.b16 %v1703
    %v2351 = vunpack.c.l.b16 %v1704
    %v2352 = vunpack.c.h.b16 %v1704
    %v2353 = vunpack.c.l.b16 %v1705
    %v2354 = vunpack.c.h.b16 %v1705
    %v2355 = vunpack.c.l.b16 %v1706
    %v2356 = vunpack.c.h.b16 %v1706
    %v2357 = vunpack.c.l.b16 %v1707
    %v2358 = vunpack.c.h.b16 %v1707
    %v2359 = vunpack.c.l.b16 %v1708
    %v2360 = vunpack.c.h.b16 %v1708
    %v2361 = vunpack.c.l.b16 %v1709
    %v2362 = vunpack.c.h.b16 %v1709
    %v2363 = vunpack.c.l.b16 %v1710
    %v2364 = vunpack.c.h.b16 %v1710
    %v2365 = vunpack.c.l.b16 %v1711
    %v2366 = vunpack.c.h.b16 %v1711
    %v2367 = vunpack.c.l.b16 %v1712
    %v2368 = vunpack.c.h.b16 %v1712
    %v2369 = vunpack.c.l.b16 %v1713
    %v2370 = vunpack.c.h.b16 %v1713
    %v2371 = vunpack.c.l.b16 %v1714
    %v2372 = vunpack.c.h.b16 %v1714
    %v2373 = vunpack.c.l.b16 %v1715
    %v2374 = vunpack.c.h.b16 %v1715
    %v2375 = vunpack.c.l.b16 %v1716
    %v2376 = vunpack.c.h.b16 %v1716
    %v2377 = vunpack.c.l.b16 %v1717
    %v2378 = vunpack.c.h.b16 %v1717
    %v2379 = vunpack.c.l.b16 %v1718
    %v2380 = vunpack.c.h.b16 %v1718
    %v2381 = vunpack.c.l.b16 %v1719
    %v2382 = vunpack.c.h.b16 %v1719
    %v2383 = vunpack.c.l.b16 %v1720
    %v2384 = vunpack.c.h.b16 %v1720
    %v2385 = vunpack.c.l.b16 %v1721
    %v2386 = vunpack.c.h.b16 %v1721
    %v2387 = vunpack.c.l.b16 %v1722
    %v2388 = vunpack.c.h.b16 %v1722
    %v2389 = vunpack.c.l.b16 %v1723
    %v2390 = vunpack.c.h.b16 %v1723
    %v2391 = vunpack.c.l.b16 %v1724
    %v2392 = vunpack.c.h.b16 %v1724
    %v2393 = vunpack.c.l.b16 %v1725
    %v2394 = vunpack.c.h.b16 %v1725
    %v2395 = vunpack.c.l.b16 %v1726
    %v2396 = vunpack.c.h.b16 %v1726
    %v2397 = vunpack.c.l.b16 %v1727
    %v2398 = vunpack.c.h.b16 %v1727
    %v2399 = vunpack.c.l.b16 %v1728
    %v2400 = vunpack.c.h.b16 %v1728
    %v2401 = vunpack.c.l.b16 %v1729
    %v2402 = vunpack.c.h.b16 %v1729
    %v2403 = vunpack.c.l.b16 %v1730
    %v2404 = vunpack.c.h.b16 %v1730
    %v2405 = vunpack.c.l.b16 %v1731
    %v2406 = vunpack.c.h.b16 %v1731
    %v2407 = vunpack.c.l.b16 %v1732
    %v2408 = vunpack.c.h.b16 %v1732
    %v2409 = vunpack.c.l.b16 %v1733
    %v2410 = vunpack.c.h.b16 %v1733
    %v2411 = vunpack.c.l.b16 %v1734
    %v2412 = vunpack.c.h.b16 %v1734
    %v2413 = vunpack.c.l.b16 %v1735
    %v2414 = vunpack.c.h.b16 %v1735
    %v2415 = vunpack.c.l.b16 %v1736
    %v2416 = vunpack.c.h.b16 %v1736
    %v2417 = vunpack.c.l.b16 %v1737
    %v2418 = vunpack.c.h.b16 %v1737
    %v2419 = vunpack.c.l.b16 %v1738
    %v2420 = vunpack.c.h.b16 %v1738
    %v2421 = vunpack.c.l.b16 %v1739
    %v2422 = vunpack.c.h.b16 %v1739
    %v2423 = vunpack.c.l.b16 %v1740
    %v2424 = vunpack.c.h.b16 %v1740
    %v2425 = vunpack.c.l.b16 %v1741
    %v2426 = vunpack.c.h.b16 %v1741
    %v2427 = vunpack.c.l.b16 %v1742
    %v2428 = vunpack.c.h.b16 %v1742
    %v2429 = vunpack.c.l.b16 %v1743
    %v2430 = vunpack.c.h.b16 %v1743
    %v2431 = vunpack.c.l.b16 %v1744
    %v2432 = vunpack.c.h.b16 %v1744
    %v2433 = vunpack.c.l.b16 %v1745
    %v2434 = vunpack.c.h.b16 %v1745
    %v2435 = vunpack.c.l.b16 %v1746
    %v2436 = vunpack.c.h.b16 %v1746
    %v2437 = vunpack.c.l.b16 %v1747
    %v2438 = vunpack.c.h.b16 %v1747
    %v2439 = vunpack.c.l.b16 %v1748
    %v2440 = vunpack.c.h.b16 %v1748
    %v2441 = vunpack.c.l.b16 %v1749
    %v2442 = vunpack.c.h.b16 %v1749
    %v2443 = vunpack.c.l.b16 %v1750
    %v2444 = vunpack.c.h.b16 %v1750
    %v2445 = vunpack.c.l.b16 %v1751
    %v2446 = vunpack.c.h.b16 %v1751
    %v2447 = vunpack.c.l.b16 %v1752
    %v2448 = vunpack.c.h.b16 %v1752
    %v2449 = vunpack.c.l.b16 %v1753
    %v2450 = vunpack.c.h.b16 %v1753
    %v2451 = vunpack.c.l.b16 %v1754
    %v2452 = vunpack.c.h.b16 %v1754
    %v2453 = vunpack.c.l.b16 %v1755
    %v2454 = vunpack.c.h.b16 %v1755
    %v2455 = vunpack.c.l.b16 %v1756
    %v2456 = vunpack.c.h.b16 %v1756
    %v2457 = vunpack.c.l.b16 %v1757
    %v2458 = vunpack.c.h.b16 %v1757
    %v2459 = vunpack.c.l.b16 %v1758
    %v2460 = vunpack.c.h.b16 %v1758
    %v2461 = vunpack.c.l.b16 %v1759
    %v2462 = vunpack.c.h.b16 %v1759
    %v2463 = vunpack.c.l.b16 %v1760
    %v2464 = vunpack.c.h.b16 %v1760
    %v2465 = vunpack.c.l.b16 %v1761
    %v2466 = vunpack.c.h.b16 %v1761
    %v2467 = vunpack.c.l.b16 %v1762
    %v2468 = vunpack.c.h.b16 %v1762
    %v2469 = vunpack.c.l.b16 %v1763
    %v2470 = vunpack.c.h.b16 %v1763
    %v2471 = vunpack.c.l.b16 %v1764
    %v2472 = vunpack.c.h.b16 %v1764
    %v2473 = vunpack.c.l.b16 %v1765
    %v2474 = vunpack.c.h.b16 %v1765
    %v2475 = vunpack.c.l.b16 %v1766
    %v2476 = vunpack.c.h.b16 %v1766
    %v2477 = vunpack.c.l.b16 %v1767
    %v2478 = vunpack.c.h.b16 %v1767
    %v2479 = vunpack.c.l.b16 %v1768
    %v2480 = vunpack.c.h.b16 %v1768
    %v2481 = vunpack.c.l.b16 %v1769
    %v2482 = vunpack.c.h.b16 %v1769
    %v2483 = vunpack.c.l.b16 %v1770
    %v2484 = vunpack.c.h.b16 %v1770
    %v2485 = vunpack.c.l.b16 %v1771
    %v2486 = vunpack.c.h.b16 %v1771
    %v2487 = vunpack.c.l.b16 %v1772
    %v2488 = vunpack.c.h.b16 %v1772
    %v2489 = vunpack.c.l.b16 %v1773
    %v2490 = vunpack.c.h.b16 %v1773
    %v2491 = vunpack.c.l.b16 %v1774
    %v2492 = vunpack.c.h.b16 %v1774
    %v2493 = vunpack.c.l.b16 %v1775
    %v2494 = vunpack.c.h.b16 %v1775
    %v2495 = vunpack.c.l.b16 %v1776
    %v2496 = vunpack.c.h.b16 %v1776
    %v2497 = vunpack.c.l.b16 %v1777
    %v2498 = vunpack.c.h.b16 %v1777
    %v2499 = vunpack.c.l.b16 %v1778
    %v2500 = vunpack.c.h.b16 %v1778
    %v2501 = vunpack.c.l.b16 %v1779
    %v2502 = vunpack.c.h.b16 %v1779
    %v2503 = vunpack.c.l.b16 %v1780
    %v2504 = vunpack.c.h.b16 %v1780
    %v2505 = vunpack.c.l.b16 %v1781
    %v2506 = vunpack.c.h.b16 %v1781
    %v2507 = vunpack.c.l.b16 %v1782
    %v2508 = vunpack.c.h.b16 %v1782
    %v2509 = vunpack.c.l.b16 %v1783
    %v2510 = vunpack.c.h.b16 %v1783
    %v2511 = vunpack.c.l.b16 %v1784
    %v2512 = vunpack.c.h.b16 %v1784
    %v2513 = vunpack.c.l.b16 %v1785
    %v2514 = vunpack.c.h.b16 %v1785
    %v2515 = vunpack.c.l.b16 %v1786
    %v2516 = vunpack.c.h.b16 %v1786
    %v2517 = vunpack.c.l.b16 %v1787
    %v2518 = vunpack.c.h.b16 %v1787
    %v2519 = vunpack.c.l.b16 %v1788
    %v2520 = vunpack.c.h.b16 %v1788
    %v2521 = vunpack.c.l.b16 %v1789
    %v2522 = vunpack.c.h.b16 %v1789
    %v2523 = vunpack.c.l.b16 %v1790
    %v2524 = vunpack.c.h.b16 %v1790
    %v2525 = vunpack.c.l.b16 %v1791
    %v2526 = vunpack.c.h.b16 %v1791
    %v2527 = vunpack.c.l.b16 %v1792
    %v2528 = vunpack.c.h.b16 %v1792
    %v2529 = vunpack.c.l.b16 %v1793
    %v2530 = vunpack.c.h.b16 %v1793
    %v2531 = vunpack.c.l.b16 %v1794
    %v2532 = vunpack.c.h.b16 %v1794
    %v2533 = vunpack.c.l.b16 %v1795
    %v2534 = vunpack.c.h.b16 %v1795
    %v2535 = vunpack.c.l.b16 %v1796
    %v2536 = vunpack.c.h.b16 %v1796
    %v2537 = vunpack.c.l.b16 %v1797
    %v2538 = vunpack.c.h.b16 %v1797
    %v2539 = vunpack.c.l.b16 %v1798
    %v2540 = vunpack.c.h.b16 %v1798
    %v2541 = vunpack.c.l.b16 %v1799
    %v2542 = vunpack.c.h.b16 %v1799
    %v2543 = vunpack.c.l.b16 %v1800
    %v2544 = vunpack.c.h.b16 %v1800
    %v2545 = vunpack.c.l.b16 %v1801
    %v2546 = vunpack.c.h.b16 %v1801
    %v2547 = vunpack.c.l.b16 %v1802
    %v2548 = vunpack.c.h.b16 %v1802
    %v2549 = vunpack.c.l.b16 %v1803
    %v2550 = vunpack.c.h.b16 %v1803
    %v2551 = vunpack.c.l.b16 %v1804
    %v2552 = vunpack.c.h.b16 %v1804
    %v2553 = vunpack.c.l.b16 %v1805
    %v2554 = vunpack.c.h.b16 %v1805
    %v2555 = vunpack.c.l.b16 %v1806
    %v2556 = vunpack.c.h.b16 %v1806
    %v2557 = vunpack.c.l.b16 %v1807
    %v2558 = vunpack.c.h.b16 %v1807
    %v2559 = vunpack.c.l.b16 %v1808
    %v2560 = vunpack.c.h.b16 %v1808
    %v2561 = vunpack.c.l.b16 %v1809
    %v2562 = vunpack.c.h.b16 %v1809
    %v2563 = vunpack.c.l.b16 %v1810
    %v2564 = vunpack.c.h.b16 %v1810
    %v2565 = vunpack.c.l.b16 %v1811
    %v2566 = vunpack.c.h.b16 %v1811
    %v2567 = vunpack.c.l.b16 %v1812
    %v2568 = vunpack.c.h.b16 %v1812
    %v2569 = vunpack.c.l.b16 %v1813
    %v2570 = vunpack.c.h.b16 %v1813
    %v2571 = vunpack.c.l.b16 %v1814
    %v2572 = vunpack.c.h.b16 %v1814
    %v2573 = vunpack.c.l.b16 %v1815
    %v2574 = vunpack.c.h.b16 %v1815
    %v2575 = vunpack.c.l.b16 %v1816
    %v2576 = vunpack.c.h.b16 %v1816
    %v2577 = vunpack.c.l.b16 %v1817
    %v2578 = vunpack.c.h.b16 %v1817
    %v2579 = vunpack.c.l.b16 %v1818
    %v2580 = vunpack.c.h.b16 %v1818
    %v2581 = vunpack.c.l.b16 %v1819
    %v2582 = vunpack.c.h.b16 %v1819
    %v2583 = vunpack.c.l.b16 %v1820
    %v2584 = vunpack.c.h.b16 %v1820
    %v2585 = vunpack.c.l.b16 %v1821
    %v2586 = vunpack.c.h.b16 %v1821
    %v2587 = vunpack.c.l.b16 %v1822
    %v2588 = vunpack.c.h.b16 %v1822
    %v2589 = vunpack.c.l.b16 %v1823
    %v2590 = vunpack.c.h.b16 %v1823
    %v2591 = vunpack.c.l.b16 %v1824
    %v2592 = vunpack.c.h.b16 %v1824
    %v2593 = vunpack.c.l.b16 %v1825
    %v2594 = vunpack.c.h.b16 %v1825
    %v2595 = vunpack.c.l.b16 %v1826
    %v2596 = vunpack.c.h.b16 %v1826
    %v2597 = vunpack.c.l.b16 %v1827
    %v2598 = vunpack.c.h.b16 %v1827
    %v2599 = vunpack.c.l.b16 %v1828
    %v2600 = vunpack.c.h.b16 %v1828
    %v2601 = vunpack.c.l.b16 %v1829
    %v2602 = vunpack.c.h.b16 %v1829
    %v2603 = vunpack.c.l.b16 %v1830
    %v2604 = vunpack.c.h.b16 %v1830
    %v2605 = vunpack.c.l.b16 %v1831
    %v2606 = vunpack.c.h.b16 %v1831
    %v2607 = vunpack.c.l.b16 %v1832
    %v2608 = vunpack.c.h.b16 %v1832
    %v2609 = vunpack.c.l.b16 %v1833
    %v2610 = vunpack.c.h.b16 %v1833
    %v2611 = vunpack.c.l.b16 %v1834
    %v2612 = vunpack.c.h.b16 %v1834
    %v2613 = vunpack.c.l.b16 %v1835
    %v2614 = vunpack.c.h.b16 %v1835
    %v2615 = vunpack.c.l.b16 %v1836
    %v2616 = vunpack.c.h.b16 %v1836
    %v2617 = vunpack.c.l.b16 %v1837
    %v2618 = vunpack.c.h.b16 %v1837
    %v2619 = vunpack.c.l.b16 %v1838
    %v2620 = vunpack.c.h.b16 %v1838
    %v2621 = vunpack.c.l.b16 %v1839
    %v2622 = vunpack.c.h.b16 %v1839
    %v2623 = vunpack.c.l.b16 %v1840
    %v2624 = vunpack.c.h.b16 %v1840
    %v2625 = vunpack.c.l.b16 %v1841
    %v2626 = vunpack.c.h.b16 %v1841
    %v2627 = vunpack.c.l.b16 %v1842
    %v2628 = vunpack.c.h.b16 %v1842
    %v2629 = vunpack.c.l.b16 %v1843
    %v2630 = vunpack.c.h.b16 %v1843
    %v2631 = vunpack.c.l.b16 %v1844
    %v2632 = vunpack.c.h.b16 %v1844
    %v2633 = vunpack.c.l.b16 %v1845
    %v2634 = vunpack.c.h.b16 %v1845
    %v2635 = vunpack.c.l.b16 %v1846
    %v2636 = vunpack.c.h.b16 %v1846
    %v2637 = vunpack.c.l.b16 %v1847
    %v2638 = vunpack.c.h.b16 %v1847
    %v2639 = vunpack.c.l.b16 %v1848
    %v2640 = vunpack.c.h.b16 %v1848
    %v2641 = vunpack.c.l.b16 %v1849
    %v2642 = vunpack.c.h.b16 %v1849
    %v2643 = vunpack.c.l.b16 %v1850
    %v2644 = vunpack.c.h.b16 %v1850
    %v2645 = vunpack.c.l.b16 %v1851
    %v2646 = vunpack.c.h.b16 %v1851
    %v2647 = vunpack.c.l.b16 %v1852
    %v2648 = vunpack.c.h.b16 %v1852
    %v2649 = vunpack.c.l.b16 %v1853
    %v2650 = vunpack.c.h.b16 %v1853
    %v2651 = vunpack.c.l.b16 %v1854
    %v2652 = vunpack.c.h.b16 %v1854
    %v2653 = vunpack.c.l.b16 %v1855
    %v2654 = vunpack.c.h.b16 %v1855
    %v2655 = vunpack.c.l.b16 %v1856
    %v2656 = vunpack.c.h.b16 %v1856
    %v2657 = vunpack.c.l.b16 %v1857
    %v2658 = vunpack.c.h.b16 %v1857
    %v2659 = vunpack.c.l.b16 %v1858
    %v2660 = vunpack.c.h.b16 %v1858
    %v2661 = vunpack.c.l.b16 %v1859
    %v2662 = vunpack.c.h.b16 %v1859
    %v2663 = vunpack.c.l.b16 %v1860
    %v2664 = vunpack.c.h.b16 %v1860
    %v2665 = vunpack.c.l.b16 %v1861
    %v2666 = vunpack.c.h.b16 %v1861
    %v2667 = vunpack.c.l.b16 %v1862
    %v2668 = vunpack.c.h.b16 %v1862
    %v2669 = vunpack.c.l.b16 %v1863
    %v2670 = vunpack.c.h.b16 %v1863
    %v2671 = vunpack.c.l.b16 %v1864
    %v2672 = vunpack.c.h.b16 %v1864
    %v2673 = vunpack.c.l.b16 %v1865
    %v2674 = vunpack.c.h.b16 %v1865
    %v2675 = vunpack.c.l.b16 %v1866
    %v2676 = vunpack.c.h.b16 %v1866
    %v2677 = vpack.c.b16 %v2173, %v2165
    %v2678 = vpack.c.b16 %v2174, %v2166
    %v2679 = vpack.c.b16 %v2175, %v2167
    %v2680 = vpack.c.b16 %v2176, %v2168
    %v2681 = vpack.c.b16 %v2177, %v2169
    %v2682 = vpack.c.b16 %v2178, %v2170
    %v2683 = vpack.c.b16 %v2179, %v2171
    %v2684 = vpack.c.b16 %v2180, %v2172
    %v2685 = vpack.c.b16 %v2189, %v2181
    %v2686 = vpack.c.b16 %v2190, %v2182
    %v2687 = vpack.c.b16 %v2191, %v2183
    %v2688 = vpack.c.b16 %v2192, %v2184
    %v2689 = vpack.c.b16 %v2193, %v2185
    %v2690 = vpack.c.b16 %v2194, %v2186
    %v2691 = vpack.c.b16 %v2195, %v2187
    %v2692 = vpack.c.b16 %v2196, %v2188
    %v2693 = vpack.c.b16 %v2205, %v2197
    %v2694 = vpack.c.b16 %v2206, %v2198
    %v2695 = vpack.c.b16 %v2207, %v2199
    %v2696 = vpack.c.b16 %v2208, %v2200
    %v2697 = vpack.c.b16 %v2209, %v2201
    %v2698 = vpack.c.b16 %v2210, %v2202
    %v2699 = vpack.c.b16 %v2211, %v2203
    %v2700 = vpack.c.b16 %v2212, %v2204
    %v2701 = vpack.c.b16 %v2221, %v2213
    %v2702 = vpack.c.b16 %v2222, %v2214
    %v2703 = vpack.c.b16 %v2223, %v2215
    %v2704 = vpack.c.b16 %v2224, %v2216
    %v2705 = vpack.c.b16 %v2225, %v2217
    %v2706 = vpack.c.b16 %v2226, %v2218
    %v2707 = vpack.c.b16 %v2227, %v2219
    %v2708 = vpack.c.b16 %v2228, %v2220
    %v2709 = vpack.c.b16 %v2237, %v2229
    %v2710 = vpack.c.b16 %v2238, %v2230
    %v2711 = vpack.c.b16 %v2239, %v2231
    %v2712 = vpack.c.b16 %v2240, %v2232
    %v2713 = vpack.c.b16 %v2241, %v2233
    %v2714 = vpack.c.b16 %v2242, %v2234
    %v2715 = vpack.c.b16 %v2243, %v2235
    %v2716 = vpack.c.b16 %v2244, %v2236
    %v2717 = vpack.c.b16 %v2253, %v2245
    %v2718 = vpack.c.b16 %v2254, %v2246
    %v2719 = vpack.c.b16 %v2255, %v2247
    %v2720 = vpack.c.b16 %v2256, %v2248
    %v2721 = vpack.c.b16 %v2257, %v2249
    %v2722 = vpack.c.b16 %v2258, %v2250
    %v2723 = vpack.c.b16 %v2259, %v2251
    %v2724 = vpack.c.b16 %v2260, %v2252
    %v2725 = vpack.c.b16 %v2269, %v2261
    %v2726 = vpack.c.b16 %v2270, %v2262
    %v2727 = vpack.c.b16 %v2271, %v2263
    %v2728 = vpack.c.b16 %v2272, %v2264
    %v2729 = vpack.c.b16 %v2273, %v2265
    %v2730 = vpack.c.b16 %v2274, %v2266
    %v2731 = vpack.c.b16 %v2275, %v2267
    %v2732 = vpack.c.b16 %v2276, %v2268
    %v2733 = vpack.c.b16 %v2285, %v2277
    %v2734 = vpack.c.b16 %v2286, %v2278
    %v2735 = vpack.c.b16 %v2287, %v2279
    %v2736 = vpack.c.b16 %v2288, %v2280
    %v2737 = vpack.c.b16 %v2289, %v2281
    %v2738 = vpack.c.b16 %v2290, %v2282
    %v2739 = vpack.c.b16 %v2291, %v2283
    %v2740 = vpack.c.b16 %v2292, %v2284
    %v2741 = vpack.c.b16 %v2301, %v2293
    %v2742 = vpack.c.b16 %v2302, %v2294
    %v2743 = vpack.c.b16 %v2303, %v2295
    %v2744 = vpack.c.b16 %v2304, %v2296
    %v2745 = vpack.c.b16 %v2305, %v2297
    %v2746 = vpack.c.b16 %v2306, %v2298
    %v2747 = vpack.c.b16 %v2307, %v2299
    %v2748 = vpack.c.b16 %v2308, %v2300
    %v2749 = vpack.c.b16 %v2317, %v2309
    %v2750 = vpack.c.b16 %v2318, %v2310
    %v2751 = vpack.c.b16 %v2319, %v2311
    %v2752 = vpack.c.b16 %v2320, %v2312
    %v2753 = vpack.c.b16 %v2321, %v2313
    %v2754 = vpack.c.b16 %v2322, %v2314
    %v2755 = vpack.c.b16 %v2323, %v2315
    %v2756 = vpack.c.b16 %v2324, %v2316
    %v2757 = vpack.c.b16 %v2333, %v2325
    %v2758 = vpack.c.b16 %v2334, %v2326
    %v2759 = vpack.c.b16 %v2335, %v2327
    %v2760 = vpack.c.b16 %v2336, %v2328
    %v2761 = vpack.c.b16 %v2337, %v2329
    %v2762 = vpack.c.b16 %v2338, %v2330
    %v2763 = vpack.c.b16 %v2339, %v2331
    %v2764 = vpack.c.b16 %v2340, %v2332
    %v2765 = vpack.c.b16 %v2349, %v2341
    %v2766 = vpack.c.b16 %v2350, %v2342
    %v2767 = vpack.c.b16 %v2351, %v2343
    %v2768 = vpack.c.b16 %v2352, %v2344
    %v2769 = vpack.c.b16 %v2353, %v2345
    %v2770 = vpack.c.b16 %v2354, %v2346
    %v2771 = vpack.c.b16 %v2355, %v2347
    %v2772 = vpack.c.b16 %v2356, %v2348
    %v2773 = vpack.c.b16 %v2365, %v2357
    %v2774 = vpack.c.b16 %v2366, %v2358
    %v2775 = vpack.c.b16 %v2367, %v2359
    %v2776 = vpack.c.b16 %v2368, %v2360
    %v2777 = vpack.c.b16 %v2369, %v2361
    %v2778 = vpack.c.b16 %v2370, %v2362
    %v2779 = vpack.c.b16 %v2371, %v2363
    %v2780 = vpack.c.b16 %v2372, %v2364
    %v2781 = vpack.c.b16 %v2381, %v2373
    %v2782 = vpack.c.b16 %v2382, %v2374
    %v2783 = vpack.c.b16 %v2383, %v2375
    %v2784 = vpack.c.b16 %v2384, %v2376
    %v2785 = vpack.c.b16 %v2385, %v2377
    %v2786 = vpack.c.b16 %v2386, %v2378
    %v2787 = vpack.c.b16 %v2387, %v2379
    %v2788 = vpack.c.b16 %v2388, %v2380
    %v2789 = vpack.c.b16 %v2397, %v2389
    %v2790 = vpack.c.b16 %v2398, %v2390
    %v2791 = vpack.c.b16 %v2399, %v2391
    %v2792 = vpack.c.b16 %v2400, %v2392
    %v2793 = vpack.c.b16 %v2401, %v2393
    %v2794 = vpack.c.b16 %v2402, %v2394
    %v2795 = vpack.c.b16 %v2403, %v2395
    %v2796 = vpack.c.b16 %v2404, %v2396
    %v2797 = vpack.c.b16 %v2413, %v2405
    %v2798 = vpack.c.b16 %v2414, %v2406
    %v2799 = vpack.c.b16 %v2415, %v2407
    %v2800 = vpack.c.b16 %v2416, %v2408
    %v2801 = vpack.c.b16 %v2417, %v2409
    %v2802 = vpack.c.b16 %v2418, %v2410
    %v2803 = vpack.c.b16 %v2419, %v2411
    %v2804 = vpack.c.b16 %v2420, %v2412
    %v2805 = vpack.c.b16 %v2429, %v2421
    %v2806 = vpack.c.b16 %v2430, %v2422
    %v2807 = vpack.c.b16 %v2431, %v2423
    %v2808 = vpack.c.b16 %v2432, %v2424
    %v2809 = vpack.c.b16 %v2433, %v2425
    %v2810 = vpack.c.b16 %v2434, %v2426
    %v2811 = vpack.c.b16 %v2435, %v2427
    %v2812 = vpack.c.b16 %v2436, %v2428
    %v2813 = vpack.c.b16 %v2445, %v2437
    %v2814 = vpack.c.b16 %v2446, %v2438
    %v2815 = vpack.c.b16 %v2447, %v2439
    %v2816 = vpack.c.b16 %v2448, %v2440
    %v2817 = vpack.c.b16 %v2449, %v2441
    %v2818 = vpack.c.b16 %v2450, %v2442
    %v2819 = vpack.c.b16 %v2451, %v2443
    %v2820 = vpack.c.b16 %v2452, %v2444
    %v2821 = vpack.c.b16 %v2461, %v2453
    %v2822 = vpack.c.b16 %v2462, %v2454
    %v2823 = vpack.c.b16 %v2463, %v2455
    %v2824 = vpack.c.b16 %v2464, %v2456
    %v2825 = vpack.c.b16 %v2465, %v2457
    %v2826 = vpack.c.b16 %v2466, %v2458
    %v2827 = vpack.c.b16 %v2467, %v2459
    %v2828 = vpack.c.b16 %v2468, %v2460
    %v2829 = vpack.c.b16 %v2477, %v2469
    %v2830 = vpack.c.b16 %v2478, %v2470
    %v2831 = vpack.c.b16 %v2479, %v2471
    %v2832 = vpack.c.b16 %v2480, %v2472
    %v2833 = vpack.c.b16 %v2481, %v2473
    %v2834 = vpack.c.b16 %v2482, %v2474
    %v2835 = vpack.c.b16 %v2483, %v2475
    %v2836 = vpack.c.b16 %v2484, %v2476
    %v2837 = vpack.c.b16 %v2493, %v2485
    %v2838 = vpack.c.b16 %v2494, %v2486
    %v2839 = vpack.c.b16 %v2495, %v2487
    %v2840 = vpack.c.b16 %v2496, %v2488
    %v2841 = vpack.c.b16 %v2497, %v2489
    %v2842 = vpack.c.b16 %v2498, %v2490
    %v2843 = vpack.c.b16 %v2499, %v2491
    %v2844 = vpack.c.b16 %v2500, %v2492
    %v2845 = vpack.c.b16 %v2509, %v2501
    %v2846 = vpack.c.b16 %v2510, %v2502
    %v2847 = vpack.c.b16 %v2511, %v2503
    %v2848 = vpack.c.b16 %v2512, %v2504
    %v2849 = vpack.c.b16 %v2513, %v2505
    %v2850 = vpack.c.b16 %v2514, %v2506
    %v2851 = vpack.c.b16 %v2515, %v2507
    %v2852 = vpack.c.b16 %v2516, %v2508
    %v2853 = vpack.c.b16 %v2525, %v2517
    %v2854 = vpack.c.b16 %v2526, %v2518
    %v2855 = vpack.c.b16 %v2527, %v2519
    %v2856 = vpack.c.b16 %v2528, %v2520
    %v2857 = vpack.c.b16 %v2529, %v2521
    %v2858 = vpack.c.b16 %v2530, %v2522
    %v2859 = vpack.c.b16 %v2531, %v2523
    %v2860 = vpack.c.b16 %v2532, %v2524
    %v2861 = vpack.c.b16 %v2541, %v2533
    %v2862 = vpack.c.b16 %v2542, %v2534
    %v2863 = vpack.c.b16 %v2543, %v2535
    %v2864 = vpack.c.b16 %v2544, %v2536
    %v2865 = vpack.c.b16 %v2545, %v2537
    %v2866 = vpack.c.b16 %v2546, %v2538
    %v2867 = vpack.c.b16 %v2547, %v2539
    %v2868 = vpack.c.b16 %v2548, %v2540
    %v2869 = vpack.c.b16 %v2557, %v2549
    %v2870 = vpack.c.b16 %v2558, %v2550
    %v2871 = vpack.c.b16 %v2559, %v2551
    %v2872 = vpack.c.b16 %v2560, %v2552
    %v2873 = vpack.c.b16 %v2561, %v2553
    %v2874 = vpack.c.b16 %v2562, %v2554
    %v2875 = vpack.c.b16 %v2563, %v2555
    %v2876 = vpack.c.b16 %v2564, %v2556
    %v2877 = vpack.c.b16 %v2573, %v2565
    %v2878 = vpack.c.b16 %v2574, %v2566
    %v2879 = vpack.c.b16 %v2575, %v2567
    %v2880 = vpack.c.b16 %v2576, %v2568
    %v2881 = vpack.c.b16 %v2577, %v2569
    %v2882 = vpack.c.b16 %v2578, %v2570
    %v2883 = vpack.c.b16 %v2579, %v2571
    %v2884 = vpack.c.b16 %v2580, %v2572
    %v2885 = vpack.c.b16 %v2589, %v2581
    %v2886 = vpack.c.b16 %v2590, %v2582
    %v2887 = vpack.c.b16 %v2591, %v2583
    %v2888 = vpack.c.b16 %v2592, %v2584
    %v2889 = vpack.c.b16 %v2593, %v2585
    %v2890 = vpack.c.b16 %v2594, %v2586
    %v2891 = vpack.c.b16 %v2595, %v2587
    %v2892 = vpack.c.b16 %v2596, %v2588
    %v2893 = vpack.c.b16 %v2605, %v2597
    %v2894 = vpack.c.b16 %v2606, %v2598
    %v2895 = vpack.c.b16 %v2607, %v2599
    %v2896 = vpack.c.b16 %v2608, %v2600
    %v2897 = vpack.c.b16 %v2609, %v2601
    %v2898 = vpack.c.b16 %v2610, %v2602
    %v2899 = vpack.c.b16 %v2611, %v2603
    %v2900 = vpack.c.b16 %v2612, %v2604
    %v2901 = vpack.c.b16 %v2621, %v2613
    %v2902 = vpack.c.b16 %v2622, %v2614
    %v2903 = vpack.c.b16 %v2623, %v2615
    %v2904 = vpack.c.b16 %v2624, %v2616
    %v2905 = vpack.c.b16 %v2625, %v2617
    %v2906 = vpack.c.b16 %v2626, %v2618
    %v2907 = vpack.c.b16 %v2627, %v2619
    %v2908 = vpack.c.b16 %v2628, %v2620
    %v2909 = vpack.c.b16 %v2637, %v2629
    %v2910 = vpack.c.b16 %v2638, %v2630
    %v2911 = vpack.c.b16 %v2639, %v2631
    %v2912 = vpack.c.b16 %v2640, %v2632
    %v2913 = vpack.c.b16 %v2641, %v2633
    %v2914 = vpack.c.b16 %v2642, %v2634
    %v2915 = vpack.c.b16 %v2643, %v2635
    %v2916 = vpack.c.b16 %v2644, %v2636
    %v2917 = vpack.c.b16 %v2653, %v2645
    %v2918 = vpack.c.b16 %v2654, %v2646
    %v2919 = vpack.c.b16 %v2655, %v2647
    %v2920 = vpack.c.b16 %v2656, %v2648
    %v2921 = vpack.c.b16 %v2657, %v2649
    %v2922 = vpack.c.b16 %v2658, %v2650
    %v2923 = vpack.c.b16 %v2659, %v2651
    %v2924 = vpack.c.b16 %v2660, %v2652
    %v2925 = vpack.c.b16 %v2669, %v2661
    %v2926 = vpack.c.b16 %v2670, %v2662
    %v2927 = vpack.c.b16 %v2671, %v2663
    %v2928 = vpack.c.b16 %v2672, %v2664
    %v2929 = vpack.c.b16 %v2673, %v2665
    %v2930 = vpack.c.b16 %v2674, %v2666
    %v2931 = vpack.c.b16 %v2675, %v2667
    %v2932 = vpack.c.b16 %v2676, %v2668
    %3189 = vmatprep.subr.bf16.mxu0 %v2678
    %3190 = vmatpush1.bf16.msra.mxu0 %v2677
    %3191 = vmatprep.subr.bf16.mxu0 %v2686
    %3192 = vmatpush1.bf16.msra.mxu0 %v2685
    %3193 = vmatprep.subr.bf16.mxu0 %v2694
    %3194 = vmatpush1.bf16.msra.mxu0 %v2693
    %3195 = vmatprep.subr.bf16.mxu0 %v2702
    %3196 = vmatpush1.bf16.msra.mxu0 %v2701
    %3197 = vmatprep.subr.bf16.mxu0 %v2710
    %3198 = vmatpush1.bf16.msra.mxu0 %v2709
    %3199 = vmatprep.subr.bf16.mxu0 %v2718
    %3200 = vmatpush1.bf16.msra.mxu0 %v2717
    %3201 = vmatprep.subr.bf16.mxu0 %v2726
    %3202 = vmatpush1.bf16.msra.mxu0 %v2725
    %3203 = vmatprep.subr.bf16.mxu0 %v2734
    %3204 = vmatpush1.bf16.msra.mxu0 %v2733
    %3205 = vmatprep.subr.bf16.mxu0 %v2742
    %3206 = vmatpush1.bf16.msra.mxu0 %v2741
    %3207 = vmatprep.subr.bf16.mxu0 %v2750
    %3208 = vmatpush1.bf16.msra.mxu0 %v2749
    %3209 = vmatprep.subr.bf16.mxu0 %v2758
    %3210 = vmatpush1.bf16.msra.mxu0 %v2757
    %3211 = vmatprep.subr.bf16.mxu0 %v2766
    %3212 = vmatpush1.bf16.msra.mxu0 %v2765
    %3213 = vmatprep.subr.bf16.mxu0 %v2774
    %3214 = vmatpush1.bf16.msra.mxu0 %v2773
    %3215 = vmatprep.subr.bf16.mxu0 %v2782
    %3216 = vmatpush1.bf16.msra.mxu0 %v2781
    %3217 = vmatprep.subr.bf16.mxu0 %v2790
    %3218 = vmatpush1.bf16.msra.mxu0 %v2789
    %3219 = vmatprep.subr.bf16.mxu0 %v2798
    %3220 = vmatpush1.bf16.msra.mxu0 %v2797
    %3221 = vmatprep.mubr.bf16.mxu0 %v1608
    %3222 = vmatmul.mubr.bf16.gmra.mrb[0].mxu0 %v1607
    %v3223 = vpop.f32.mrb[0].mxu0
    %v3224 = vadd.f32 %v1872, %v3223
    %v3225 = vpop.f32.mrb[0].mxu0
    %v3226 = vadd.f32 %v1876, %v3225
    %v3227 = vpop.f32.mrb[0].mxu0
    %v3228 = vpop.f32.mrb[0].mxu0
    %3229 = vdwg.mxu0
    %3230 = vmatprep.subr.bf16.mxu0 %v2806
    %3231 = vmatpush1.bf16.msra.mxu0 %v2805
    %3232 = vmatprep.subr.bf16.mxu0 %v2814
    %3233 = vmatpush1.bf16.msra.mxu0 %v2813
    %3234 = vmatprep.subr.bf16.mxu0 %v2822
    %3235 = vmatpush1.bf16.msra.mxu0 %v2821
    %3236 = vmatprep.subr.bf16.mxu0 %v2830
    %3237 = vmatpush1.bf16.msra.mxu0 %v2829
    %3238 = vmatprep.subr.bf16.mxu0 %v2838
    %3239 = vmatpush1.bf16.msra.mxu0 %v2837
    %3240 = vmatprep.subr.bf16.mxu0 %v2846
    %3241 = vmatpush1.bf16.msra.mxu0 %v2845
    %3242 = vmatprep.subr.bf16.mxu0 %v2854
    %3243 = vmatpush1.bf16.msra.mxu0 %v2853
    %3244 = vmatprep.subr.bf16.mxu0 %v2862
    %3245 = vmatpush1.bf16.msra.mxu0 %v2861
    %3246 = vmatprep.subr.bf16.mxu0 %v2870
    %3247 = vmatpush1.bf16.msra.mxu0 %v2869
    %3248 = vmatprep.subr.bf16.mxu0 %v2878
    %3249 = vmatpush1.bf16.msra.mxu0 %v2877
    %3250 = vmatprep.subr.bf16.mxu0 %v2886
    %3251 = vmatpush1.bf16.msra.mxu0 %v2885
    %3252 = vmatprep.subr.bf16.mxu0 %v2894
    %3253 = vmatpush1.bf16.msra.mxu0 %v2893
    %3254 = vmatprep.subr.bf16.mxu0 %v2902
    %3255 = vmatpush1.bf16.msra.mxu0 %v2901
    %3256 = vmatprep.subr.bf16.mxu0 %v2910
    %3257 = vmatpush1.bf16.msra.mxu0 %v2909
    %3258 = vmatprep.subr.bf16.mxu0 %v2918
    %3259 = vmatpush1.bf16.msra.mxu0 %v2917
    %3260 = vmatprep.subr.bf16.mxu0 %v2926
    %3261 = vmatpush1.bf16.msra.mxu0 %v2925
    %3262 = vmatprep.mubr.bf16.mxu0 %v1610
    %3263 = vmatmul.mubr.bf16.gmra.mrb[0].mxu0 %v1609
    %v3264 = vpop.f32.mrb[0].mxu0
    %v3265 = vadd.f32 %v3224, %v3264
    %v3266 = vpop.f32.mrb[0].mxu0
    %v3267 = vadd.f32 %v3226, %v3266
    %v3268 = vpop.f32.mrb[0].mxu0
    %v3269 = vpop.f32.mrb[0].mxu0
    %3270 = vdwg.mxu0
    %3271 = vmatprep.subr.bf16.mxu0 %v2680
    %3272 = vmatpush1.bf16.msra.mxu0 %v2679
    %3273 = vmatprep.subr.bf16.mxu0 %v2688
    %3274 = vmatpush1.bf16.msra.mxu0 %v2687
    %3275 = vmatprep.subr.bf16.mxu0 %v2696
    %3276 = vmatpush1.bf16.msra.mxu0 %v2695
    %3277 = vmatprep.subr.bf16.mxu0 %v2704
    %3278 = vmatpush1.bf16.msra.mxu0 %v2703
    %3279 = vmatprep.subr.bf16.mxu0 %v2712
    %3280 = vmatpush1.bf16.msra.mxu0 %v2711
    %3281 = vmatprep.subr.bf16.mxu0 %v2720
    %3282 = vmatpush1.bf16.msra.mxu0 %v2719
    %3283 = vmatprep.subr.bf16.mxu0 %v2728
    %3284 = vmatpush1.bf16.msra.mxu0 %v2727
    %3285 = vmatprep.subr.bf16.mxu0 %v2736
    %3286 = vmatpush1.bf16.msra.mxu0 %v2735
    %3287 = vmatprep.subr.bf16.mxu0 %v2744
    %3288 = vmatpush1.bf16.msra.mxu0 %v2743
    %3289 = vmatprep.subr.bf16.mxu0 %v2752
    %3290 = vmatpush1.bf16.msra.mxu0 %v2751
    %3291 = vmatprep.subr.bf16.mxu0 %v2760
    %3292 = vmatpush1.bf16.msra.mxu0 %v2759
    %3293 = vmatprep.subr.bf16.mxu0 %v2768
    %3294 = vmatpush1.bf16.msra.mxu0 %v2767
    %3295 = vmatprep.subr.bf16.mxu0 %v2776
    %3296 = vmatpush1.bf16.msra.mxu0 %v2775
    %3297 = vmatprep.subr.bf16.mxu0 %v2784
    %3298 = vmatpush1.bf16.msra.mxu0 %v2783
    %3299 = vmatprep.subr.bf16.mxu0 %v2792
    %3300 = vmatpush1.bf16.msra.mxu0 %v2791
    %3301 = vmatprep.subr.bf16.mxu0 %v2800
    %3302 = vmatpush1.bf16.msra.mxu0 %v2799
    %3303 = vmatprep.mubr.bf16.mxu0 %v1608
    %3304 = vmatmul.mubr.bf16.gmra.mrb[0].mxu0 %v1607
    %v3305 = vpop.f32.mrb[0].mxu0
    %v3306 = vadd.f32 %v1880, %v3305
    %v3307 = vpop.f32.mrb[0].mxu0
    %v3308 = vadd.f32 %v1884, %v3307
    %v3309 = vpop.f32.mrb[0].mxu0
    %v3310 = vpop.f32.mrb[0].mxu0
    %3311 = vdwg.mxu0
    %3312 = vmatprep.subr.bf16.mxu0 %v2808
    %3313 = vmatpush1.bf16.msra.mxu0 %v2807
    %3314 = vmatprep.subr.bf16.mxu0 %v2816
    %3315 = vmatpush1.bf16.msra.mxu0 %v2815
    %3316 = vmatprep.subr.bf16.mxu0 %v2824
    %3317 = vmatpush1.bf16.msra.mxu0 %v2823
    %3318 = vmatprep.subr.bf16.mxu0 %v2832
    %3319 = vmatpush1.bf16.msra.mxu0 %v2831
    %3320 = vmatprep.subr.bf16.mxu0 %v2840
    %3321 = vmatpush1.bf16.msra.mxu0 %v2839
    %3322 = vmatprep.subr.bf16.mxu0 %v2848
    %3323 = vmatpush1.bf16.msra.mxu0 %v2847
    %3324 = vmatprep.subr.bf16.mxu0 %v2856
    %3325 = vmatpush1.bf16.msra.mxu0 %v2855
    %3326 = vmatprep.subr.bf16.mxu0 %v2864
    %3327 = vmatpush1.bf16.msra.mxu0 %v2863
    %3328 = vmatprep.subr.bf16.mxu0 %v2872
    %3329 = vmatpush1.bf16.msra.mxu0 %v2871
    %3330 = vmatprep.subr.bf16.mxu0 %v2880
    %3331 = vmatpush1.bf16.msra.mxu0 %v2879
    %3332 = vmatprep.subr.bf16.mxu0 %v2888
    %3333 = vmatpush1.bf16.msra.mxu0 %v2887
    %3334 = vmatprep.subr.bf16.mxu0 %v2896
    %3335 = vmatpush1.bf16.msra.mxu0 %v2895
    %3336 = vmatprep.subr.bf16.mxu0 %v2904
    %3337 = vmatpush1.bf16.msra.mxu0 %v2903
    %3338 = vmatprep.subr.bf16.mxu0 %v2912
    %3339 = vmatpush1.bf16.msra.mxu0 %v2911
    %3340 = vmatprep.subr.bf16.mxu0 %v2920
    %3341 = vmatpush1.bf16.msra.mxu0 %v2919
    %3342 = vmatprep.subr.bf16.mxu0 %v2928
    %3343 = vmatpush1.bf16.msra.mxu0 %v2927
    %3344 = vmatprep.mubr.bf16.mxu0 %v1610
    %3345 = vmatmul.mubr.bf16.gmra.mrb[0].mxu0 %v1609
    %v3346 = vpop.f32.mrb[0].mxu0
    %v3347 = vadd.f32 %v3306, %v3346
    %v3348 = vpop.f32.mrb[0].mxu0
    %v3349 = vadd.f32 %v3308, %v3348
    %v3350 = vpop.f32.mrb[0].mxu0
    %v3351 = vpop.f32.mrb[0].mxu0
    %3352 = vdwg.mxu0
    %3353 = vmatprep.subr.bf16.mxu0 %v2682
    %3354 = vmatpush1.bf16.msra.mxu0 %v2681
    %3355 = vmatprep.subr.bf16.mxu0 %v2690
    %3356 = vmatpush1.bf16.msra.mxu0 %v2689
    %3357 = vmatprep.subr.bf16.mxu0 %v2698
    %3358 = vmatpush1.bf16.msra.mxu0 %v2697
    %3359 = vmatprep.subr.bf16.mxu0 %v2706
    %3360 = vmatpush1.bf16.msra.mxu0 %v2705
    %3361 = vmatprep.subr.bf16.mxu0 %v2714
    %3362 = vmatpush1.bf16.msra.mxu0 %v2713
    %3363 = vmatprep.subr.bf16.mxu0 %v2722
    %3364 = vmatpush1.bf16.msra.mxu0 %v2721
    %3365 = vmatprep.subr.bf16.mxu0 %v2730
    %3366 = vmatpush1.bf16.msra.mxu0 %v2729
    %3367 = vmatprep.subr.bf16.mxu0 %v2738
    %3368 = vmatpush1.bf16.msra.mxu0 %v2737
    %3369 = vmatprep.subr.bf16.mxu0 %v2746
    %3370 = vmatpush1.bf16.msra.mxu0 %v2745
    %3371 = vmatprep.subr.bf16.mxu0 %v2754
    %3372 = vmatpush1.bf16.msra.mxu0 %v2753
    %3373 = vmatprep.subr.bf16.mxu0 %v2762
    %3374 = vmatpush1.bf16.msra.mxu0 %v2761
    %3375 = vmatprep.subr.bf16.mxu0 %v2770
    %3376 = vmatpush1.bf16.msra.mxu0 %v2769
    %3377 = vmatprep.subr.bf16.mxu0 %v2778
    %3378 = vmatpush1.bf16.msra.mxu0 %v2777
    %3379 = vmatprep.subr.bf16.mxu0 %v2786
    %3380 = vmatpush1.bf16.msra.mxu0 %v2785
    %3381 = vmatprep.subr.bf16.mxu0 %v2794
    %3382 = vmatpush1.bf16.msra.mxu0 %v2793
    %3383 = vmatprep.subr.bf16.mxu0 %v2802
    %3384 = vmatpush1.bf16.msra.mxu0 %v2801
    %3385 = vmatprep.mubr.bf16.mxu0 %v1608
    %3386 = vmatmul.mubr.bf16.gmra.mrb[0].mxu0 %v1607
    %v3387 = vpop.f32.mrb[0].mxu0
    %v3388 = vadd.f32 %v1888, %v3387
    %v3389 = vpop.f32.mrb[0].mxu0
    %v3390 = vadd.f32 %v1892, %v3389
    %v3391 = vpop.f32.mrb[0].mxu0
    %v3392 = vpop.f32.mrb[0].mxu0
    %3393 = vdwg.mxu0
    %3394 = vmatprep.subr.bf16.mxu0 %v2810
    %3395 = vmatpush1.bf16.msra.mxu0 %v2809
    %3396 = vmatprep.subr.bf16.mxu0 %v2818
    %3397 = vmatpush1.bf16.msra.mxu0 %v2817
    %3398 = vmatprep.subr.bf16.mxu0 %v2826
    %3399 = vmatpush1.bf16.msra.mxu0 %v2825
    %3400 = vmatprep.subr.bf16.mxu0 %v2834
    %3401 = vmatpush1.bf16.msra.mxu0 %v2833
    %3402 = vmatprep.subr.bf16.mxu0 %v2842
    %3403 = vmatpush1.bf16.msra.mxu0 %v2841
    %3404 = vmatprep.subr.bf16.mxu0 %v2850
    %3405 = vmatpush1.bf16.msra.mxu0 %v2849
    %3406 = vmatprep.subr.bf16.mxu0 %v2858
    %3407 = vmatpush1.bf16.msra.mxu0 %v2857
    %3408 = vmatprep.subr.bf16.mxu0 %v2866
    %3409 = vmatpush1.bf16.msra.mxu0 %v2865
    %3410 = vmatprep.subr.bf16.mxu0 %v2874
    %3411 = vmatpush1.bf16.msra.mxu0 %v2873
    %3412 = vmatprep.subr.bf16.mxu0 %v2882
    %3413 = vmatpush1.bf16.msra.mxu0 %v2881
    %3414 = vmatprep.subr.bf16.mxu0 %v2890
    %3415 = vmatpush1.bf16.msra.mxu0 %v2889
    %3416 = vmatprep.subr.bf16.mxu0 %v2898
    %3417 = vmatpush1.bf16.msra.mxu0 %v2897
    %3418 = vmatprep.subr.bf16.mxu0 %v2906
    %3419 = vmatpush1.bf16.msra.mxu0 %v2905
    %3420 = vmatprep.subr.bf16.mxu0 %v2914
    %3421 = vmatpush1.bf16.msra.mxu0 %v2913
    %3422 = vmatprep.subr.bf16.mxu0 %v2922
    %3423 = vmatpush1.bf16.msra.mxu0 %v2921
    %3424 = vmatprep.subr.bf16.mxu0 %v2930
    %3425 = vmatpush1.bf16.msra.mxu0 %v2929
    %3426 = vmatprep.mubr.bf16.mxu0 %v1610
    %3427 = vmatmul.mubr.bf16.gmra.mrb[0].mxu0 %v1609
    %v3428 = vpop.f32.mrb[0].mxu0
    %v3429 = vadd.f32 %v3388, %v3428
    %v3430 = vpop.f32.mrb[0].mxu0
    %v3431 = vadd.f32 %v3390, %v3430
    %v3432 = vpop.f32.mrb[0].mxu0
    %v3433 = vpop.f32.mrb[0].mxu0
    %3434 = vdwg.mxu0
    %3435 = vmatprep.subr.bf16.mxu0 %v2684
    %3436 = vmatpush1.bf16.msra.mxu0 %v2683
    %3437 = vmatprep.subr.bf16.mxu0 %v2692
    %3438 = vmatpush1.bf16.msra.mxu0 %v2691
    %3439 = vmatprep.subr.bf16.mxu0 %v2700
    %3440 = vmatpush1.bf16.msra.mxu0 %v2699
    %3441 = vmatprep.subr.bf16.mxu0 %v2708
    %3442 = vmatpush1.bf16.msra.mxu0 %v2707
    %3443 = vmatprep.subr.bf16.mxu0 %v2716
    %3444 = vmatpush1.bf16.msra.mxu0 %v2715
    %3445 = vmatprep.subr.bf16.mxu0 %v2724
    %3446 = vmatpush1.bf16.msra.mxu0 %v2723
    %3447 = vmatprep.subr.bf16.mxu0 %v2732
    %3448 = vmatpush1.bf16.msra.mxu0 %v2731
    %3449 = vmatprep.subr.bf16.mxu0 %v2740
    %3450 = vmatpush1.bf16.msra.mxu0 %v2739
    %3451 = vmatprep.subr.bf16.mxu0 %v2748
    %3452 = vmatpush1.bf16.msra.mxu0 %v2747
    %3453 = vmatprep.subr.bf16.mxu0 %v2756
    %3454 = vmatpush1.bf16.msra.mxu0 %v2755
    %3455 = vmatprep.subr.bf16.mxu0 %v2764
    %3456 = vmatpush1.bf16.msra.mxu0 %v2763
    %3457 = vmatprep.subr.bf16.mxu0 %v2772
    %3458 = vmatpush1.bf16.msra.mxu0 %v2771
    %3459 = vmatprep.subr.bf16.mxu0 %v2780
    %3460 = vmatpush1.bf16.msra.mxu0 %v2779
    %3461 = vmatprep.subr.bf16.mxu0 %v2788
    %3462 = vmatpush1.bf16.msra.mxu0 %v2787
    %3463 = vmatprep.subr.bf16.mxu0 %v2796
    %3464 = vmatpush1.bf16.msra.mxu0 %v2795
    %3465 = vmatprep.subr.bf16.mxu0 %v2804
    %3466 = vmatpush1.bf16.msra.mxu0 %v2803
    %3467 = vmatprep.mubr.bf16.mxu0 %v1608
    %3468 = vmatmul.mubr.bf16.gmra.mrb[0].mxu0 %v1607
    %v3469 = vpop.f32.mrb[0].mxu0
    %v3470 = vadd.f32 %v1896, %v3469
    %v3471 = vpop.f32.mrb[0].mxu0
    %v3472 = vadd.f32 %v1900, %v3471
    %v3473 = vpop.f32.mrb[0].mxu0
    %v3474 = vpop.f32.mrb[0].mxu0
    %3475 = vdwg.mxu0
    %3476 = vmatprep.subr.bf16.mxu0 %v2812
    %3477 = vmatpush1.bf16.msra.mxu0 %v2811
    %3478 = vmatprep.subr.bf16.mxu0 %v2820
    %3479 = vmatpush1.bf16.msra.mxu0 %v2819
    %3480 = vmatprep.subr.bf16.mxu0 %v2828
    %3481 = vmatpush1.bf16.msra.mxu0 %v2827
    %3482 = vmatprep.subr.bf16.mxu0 %v2836
    %3483 = vmatpush1.bf16.msra.mxu0 %v2835
    %3484 = vmatprep.subr.bf16.mxu0 %v2844
    %3485 = vmatpush1.bf16.msra.mxu0 %v2843
    %3486 = vmatprep.subr.bf16.mxu0 %v2852
    %3487 = vmatpush1.bf16.msra.mxu0 %v2851
    %3488 = vmatprep.subr.bf16.mxu0 %v2860
    %3489 = vmatpush1.bf16.msra.mxu0 %v2859
    %3490 = vmatprep.subr.bf16.mxu0 %v2868
    %3491 = vmatpush1.bf16.msra.mxu0 %v2867
    %3492 = vmatprep.subr.bf16.mxu0 %v2876
    %3493 = vmatpush1.bf16.msra.mxu0 %v2875
    %3494 = vmatprep.subr.bf16.mxu0 %v2884
    %3495 = vmatpush1.bf16.msra.mxu0 %v2883
    %3496 = vmatprep.subr.bf16.mxu0 %v2892
    %3497 = vmatpush1.bf16.msra.mxu0 %v2891
    %3498 = vmatprep.subr.bf16.mxu0 %v2900
    %3499 = vmatpush1.bf16.msra.mxu0 %v2899
    %3500 = vmatprep.subr.bf16.mxu0 %v2908
    %3501 = vmatpush1.bf16.msra.mxu0 %v2907
    %3502 = vmatprep.subr.bf16.mxu0 %v2916
    %3503 = vmatpush1.bf16.msra.mxu0 %v2915
    %3504 = vmatprep.subr.bf16.mxu0 %v2924
    %3505 = vmatpush1.bf16.msra.mxu0 %v2923
    %3506 = vmatprep.subr.bf16.mxu0 %v2932
    %3507 = vmatpush1.bf16.msra.mxu0 %v2931
    %3508 = vmatprep.mubr.bf16.mxu0 %v1610
    %3509 = vmatmul.mubr.bf16.gmra.mrb[0].mxu0 %v1609
    %v3510 = vpop.f32.mrb[0].mxu0
    %v3511 = vadd.f32 %v3470, %v3510
    %v3512 = vpop.f32.mrb[0].mxu0
    %v3513 = vadd.f32 %v3472, %v3512
    %v3514 = vpop.f32.mrb[0].mxu0
    %v3515 = vpop.f32.mrb[0].mxu0
    %3516 = vdwg.mxu0
    %v3517 = vmax.f32 %v3265, 0.0
    %v3518 = vmax.f32 %v3267, 0.0
    %v3519 = vmax.f32 %v3347, 0.0
    %v3520 = vmax.f32 %v3349, 0.0
    %v3521 = vmax.f32 %v3429, 0.0
    %v3522 = vmax.f32 %v3431, 0.0
    %v3523 = vmax.f32 %v3511, 0.0
    %v3524 = vmax.f32 %v3513, 0.0
    %v3533 = vcombine.low %v3517, %v3518
    %v3534 = vcombine.low %v3519, %v3520
    %v3536 = vunpack.c.l.s4 1983009808
    %v3537 = vunpack.c.0.s8 %v3536
    %v3538 = vlaneseq
    %v3539 = vshrl.u32 %v3538, 7
    %v3540 = vsub.s32 %v3537, %v3539
    %v3541 = vrot.slane %v3533, %v3540
    %v3543 = vunpack.c.l.s4 1983009808
    %v3544 = vunpack.c.0.s8 %v3543
    %v3545 = vlaneseq
    %v3546 = vshrl.u32 %v3545, 7
    %v3547 = vsub.s32 %v3544, %v3546
    %v3548 = vrot.slane %v3534, %v3547
    %v3549 = vcombine.low %v3541, %v3548
    %v3550 = vcombine.low %v3521, %v3522
    %v3551 = vcombine.low %v3523, %v3524
    %v3553 = vunpack.c.l.s4 1983009808
    %v3554 = vunpack.c.0.s8 %v3553
    %v3555 = vlaneseq
    %v3556 = vshrl.u32 %v3555, 7
    %v3557 = vsub.s32 %v3554, %v3556
    %v3558 = vrot.slane %v3550, %v3557
    %v3560 = vunpack.c.l.s4 1983009808
    %v3561 = vunpack.c.0.s8 %v3560
    %v3562 = vlaneseq
    %v3563 = vshrl.u32 %v3562, 7
    %v3564 = vsub.s32 %v3561, %v3563
    %v3565 = vrot.slane %v3551, %v3564
    %v3566 = vcombine.low %v3558, %v3565
    %3569 = vst [vmem:[#allocation2] sm:$0xff] %v3549
    %vm3570 = vcmask 1041408
    %vm3571 = vcmask 1043458
    %vm3572 = vmor %vm3571, %vm3570
    %vm3573 = vcmask 1045508
    %vm3574 = vmor %vm3573, %vm3572
    %vm3575 = vcmask 850950
    %vm3576 = vmor %vm3575, %vm3574
    %3577 = vst.msk [vmem:[#allocation2 + $0x8] sm:$0xff] %vm3576, %v3566
    // Predicated region
    $region22: #{layer1_forward.1} parent=1 // pred_check
      _
    $region23: #{layer1_forward.1} parent=1 // pred_check_branch
      %3579 = sbr.rel (0) target = $region25
    $region24: #{layer1_forward.1} parent=1 // pred_region
      %s3581 = ssub.s32 256, 256
      %3582 = vsyncadd [#allocation3], %s3581
      %s3584 = sshll.u32 [#allocation2], 4
      %s3585 = int_to_ptr.vmem [resolvable:$true] %s3584
      %3587 = dma.vmem_to_hbm [thread:$0]  %s3585, 256, %s5, [#allocation3]
    $region25: #{layer1_forward.1} parent=1 // pred_fallthru
      _
    // Predicated region
    $region26: #{layer1_forward.1} parent=1 // pred_check
      _
    $region27: #{layer1_forward.1} parent=1 // pred_check_branch
      %3589 = sbr.rel (0) target = $region29
    $region28: #{layer1_forward.1} parent=1 // pred_region
      %3590 = dma.done [#allocation3], 256
    $region29: #{layer1_forward.1} parent=1 // pred_fallthru
      _
    %3591 = vsyncpa [#allocation3], 1

</llo_original>
